<compile_context>
chip_gen: v6e
topology: v6e:2x2x1
jax: 0.10.0
libtpu: 0.0.40
codegen_flags: <defaults>
</compile_context>

<pallas_src>
import functools

import jax
import jax.numpy as jnp
import numpy as np
from jax import lax
from jax.experimental import pallas as pl
from jax.experimental.pallas import tpu as pltpu

_TAPS = tuple((dh, dw) for dh in (-1, 0, 1) for dw in (-1, 0, 1))


def _dhead_kernel(x_ref, w1_ref, b1_ref, w2_ref, b2_ref, o_ref,
                  xpad, hpad, s1, s2, *, H, W, g, base, cin):
    # x_ref : (g, Cin, HW)        bf16 flattened NCHW input, g images per step
    # w1_ref: (Chid, 9*Cin_p)     bf16 folded conv1 weights (tap-major K)
    # b1_ref: (Chid, 1)           f32
    # w2_ref: (Cout, 9*Chid)      bf16 folded conv2 weights
    # b2_ref: (Cout, 1)           f32
    # o_ref : (g, Cout, HW)       f32
    # xpad  : (Cin_p, g*Limg)     bf16 zero-padded per-image input segments
    # hpad  : (Chid,  g*Limg)     bf16 zero-padded hidden activation
    # s1    : (9*Cin_p, g*HW)     bf16 im2col stack for conv1
    # s2    : (9*Chid,  g*HW)     bf16 im2col stack for conv2
    HW = H * W
    limg = base + HW + base  # per-image padded segment (128-aligned interior)

    # One-time zeroing: halo bands + zero-padded channel rows stay zero across
    # grid steps (scratch persists); interiors are fully overwritten each step.
    @pl.when(pl.program_id(0) == 0)
    def _():
        xpad[...] = jnp.zeros_like(xpad)
        hpad[...] = jnp.zeros_like(hpad)

    # Column masks for the horizontal taps (dw = +/-1 wrap across row edges in
    # the flattened layout).  Hoisted: shared by both convs and all images.
    col = lax.broadcasted_iota(jnp.int32, (1, HW), 1) % W
    not_first = col != 0        # mask for dw == -1
    not_last = col != (W - 1)   # mask for dw == +1

    def build_im2col(src_pad, s_ref):
        # Stack the 9 taps of every image along the contraction (sublane) axis.
        c = src_pad.shape[0]
        for j in range(g):
            ib = j * limg + base
            for t, (dh, dw) in enumerate(_TAPS):
                a = ib + dh * W + dw
                tap = src_pad[:, a:a + HW]                       # (c, HW) bf16
                if dw == -1:
                    tap = jnp.where(not_first, tap, jnp.zeros_like(tap))
                elif dw == 1:
                    tap = jnp.where(not_last, tap, jnp.zeros_like(tap))
                s_ref[t * c:(t + 1) * c, j * HW:(j + 1) * HW] = tap

    # ---- conv1 + ReLU (single MXU matmul, K = 9*Cin_p) ----------------------
    for j in range(g):
        xpad[:cin, j * limg + base:j * limg + base + HW] = x_ref[j]
    build_im2col(xpad, s1)
    hidden = jnp.dot(w1_ref[...], s1[...], preferred_element_type=jnp.float32)
    hidden = jnp.maximum(hidden + b1_ref[...], 0.0)              # (Chid, g*HW)
    hidden = hidden.astype(jnp.bfloat16)

    # ---- conv2 + tanh (fully fused, hidden never leaves VMEM) ---------------
    for j in range(g):
        hpad[:, j * limg + base:j * limg + base + HW] = \
            hidden[:, j * HW:(j + 1) * HW]
    build_im2col(hpad, s2)
    out = jnp.dot(w2_ref[...], s2[...], preferred_element_type=jnp.float32)
    out = jnp.tanh(out + b2_ref[...])                            # (Cout, g*HW)
    for j in range(g):
        o_ref[j] = out[:, j * HW:(j + 1) * HW].astype(o_ref.dtype)


def prepare_dhead_params(w1, b1, w2, b2):
    """Fold conv weights once (hoisted out of the per-call path).

    (O, I, 3, 3) -> (O, 9*I_pad) bf16 with contraction index k = tap*I_pad + c,
    tap = (dh+1)*3 + (dw+1).  Input channels are zero-padded to a multiple of 8
    so the im2col sublane offsets are aligned.
    """
    def fold(w, cpad):
        o, i, kh, kw = w.shape
        wp = jnp.pad(w, ((0, 0), (0, cpad - i), (0, 0), (0, 0)))
        return (jnp.transpose(wp, (0, 2, 3, 1))
                .reshape(o, kh * kw * cpad).astype(jnp.bfloat16))

    cin = w1.shape[1]
    cin_p = max(8, -(-cin // 8) * 8)
    chid = w1.shape[0]
    return dict(
        w1f=fold(w1, cin_p),
        w2f=fold(w2, chid),
        b1c=b1.reshape(-1, 1).astype(jnp.float32),
        b2c=b2.reshape(-1, 1).astype(jnp.float32),
        cin=cin, cin_p=cin_p)


def dhead_apply(params, x, *, images_per_step=None):
    """DHead forward: tanh(conv2(relu(conv1(x)))).  x: (N, Cin, H, W) NCHW."""
    N, Cin, H, W = x.shape
    assert Cin == params["cin"]
    HW = H * W                       # lane-dense when H*W % 128 == 0 (it is here)
    g = N if images_per_step is None else images_per_step
    assert N % g == 0
    G = N // g
    base = -(-(W + 1) // 128) * 128  # 128-aligned halo band, >= W+1
    limg = base + HW + base
    cin_p = params["cin_p"]
    chid = params["w1f"].shape[0]
    cout = params["w2f"].shape[0]

    x2 = x.reshape(N, Cin, HW).astype(jnp.bfloat16)   # free reshape + bf16 cast

    kernel = functools.partial(_dhead_kernel, H=H, W=W, g=g, base=base, cin=Cin)
    out2 = pl.pallas_call(
        kernel,
        out_shape=jax.ShapeDtypeStruct((N, cout, HW), jnp.float32),
        grid=(G,),
        in_specs=[
            pl.BlockSpec((g, Cin, HW), lambda i: (i, 0, 0)),
            pl.BlockSpec((chid, 9 * cin_p), lambda i: (0, 0)),
            pl.BlockSpec((chid, 1), lambda i: (0, 0)),
            pl.BlockSpec((cout, 9 * chid), lambda i: (0, 0)),
            pl.BlockSpec((cout, 1), lambda i: (0, 0)),
        ],
        out_specs=pl.BlockSpec((g, cout, HW), lambda i: (i, 0, 0)),
        scratch_shapes=[
            pltpu.VMEM((cin_p, g * limg), jnp.bfloat16),    # xpad
            pltpu.VMEM((chid, g * limg), jnp.bfloat16),     # hpad
            pltpu.VMEM((9 * cin_p, g * HW), jnp.bfloat16),  # im2col conv1
            pltpu.VMEM((9 * chid, g * HW), jnp.bfloat16),   # im2col conv2
        ],
        # "arbitrary": single sequential core owns the scratch, so the one-time
        # (program_id == 0) halo zeroing is always valid.
        compiler_params=pltpu.CompilerParams(
            dimension_semantics=("arbitrary",)),
    )(x2, params["w1f"], params["b1c"], params["w2f"], params["b2c"])
    return out2.reshape(N, cout, H, W)


def dhead_forward(x, w1, b1, w2, b2):
    return dhead_apply(prepare_dhead_params(w1, b1, w2, b2), x)


if __name__ == "__main__":
    key = jax.random.PRNGKey(0)
    N, Cin, H, W = 2, 4, 16, 16        # small synthetic config (input_dim=4)
    Chid, Cout = 32, 2                 # hidden_dim=32; DHead's conv2 outputs 2
    kx, k1, kb1, k2, kb2 = jax.random.split(key, 5)
    x = jax.random.normal(kx, (N, Cin, H, W), dtype=jnp.float32)
    w1 = jax.random.normal(k1, (Chid, Cin, 3, 3), dtype=jnp.float32) * 0.1
    b1 = jax.random.normal(kb1, (Chid,), dtype=jnp.float32) * 0.1
    w2 = jax.random.normal(k2, (Cout, Chid, 3, 3), dtype=jnp.float32) * 0.1
    b2 = jax.random.normal(kb2, (Cout,), dtype=jnp.float32) * 0.1

    params = prepare_dhead_params(w1, b1, w2, b2)   # weight folding hoisted
    out = jax.block_until_ready(dhead_apply(params, x))
    assert out.shape == (N, Cout, H, W)

    # Reference: XLA convs at highest precision (kernel uses bf16 MXU + f32 acc).
    def conv(z, w, b):
        return lax.conv_general_dilated(
            z, w, window_strides=(1, 1), padding=((1, 1), (1, 1)),
            dimension_numbers=("NCHW", "OIHW", "NCHW"),
            precision=lax.Precision.HIGHEST) + b.reshape(1, -1, 1, 1)

    ref = jnp.tanh(conv(jax.nn.relu(conv(x, w1, b1)), w2, b2))
    np.testing.assert_allclose(np.asarray(out), np.asarray(ref), rtol=2e-2, atol=2e-2)
    print("KERNEL_OK")
</pallas_src>

<mosaic_0001>
module attributes {stable_mosaic.version = 11 : i64} {
  func.func @_dhead_kernel(%arg0: i32, %arg1: memref<2x4x256xbf16, #tpu.memory_space<vmem>>, %arg2: memref<32x72xbf16, #tpu.memory_space<vmem>>, %arg3: memref<32x1xf32, #tpu.memory_space<vmem>>, %arg4: memref<2x288xbf16, #tpu.memory_space<vmem>>, %arg5: memref<2x1xf32, #tpu.memory_space<vmem>>, %arg6: memref<2x2x256xf32, #tpu.memory_space<vmem>>, %arg7: memref<8x1024xbf16, #tpu.memory_space<vmem>>, %arg8: memref<32x1024xbf16, #tpu.memory_space<vmem>>, %arg9: memref<72x512xbf16, #tpu.memory_space<vmem>>, %arg10: memref<288x512xbf16, #tpu.memory_space<vmem>>) attributes {dimension_semantics = [#tpu.dimension_semantics<arbitrary>], iteration_bounds = array<i64: 1>, scalar_prefetch = 0 : i64, scratch_operands = 4 : i64, tpu.core_type = #tpu.core_type<tc>, window_params = [{transform_indices = @transform_0, window_bounds = array<i64: 2, 4, 256>}, {pipeline_mode = #tpu.pipeline_mode<synchronous>, transform_indices = @transform_1, window_bounds = array<i64: 32, 72>}, {pipeline_mode = #tpu.pipeline_mode<synchronous>, transform_indices = @transform_2, window_bounds = array<i64: 32, 1>}, {pipeline_mode = #tpu.pipeline_mode<synchronous>, transform_indices = @transform_3, window_bounds = array<i64: 2, 288>}, {pipeline_mode = #tpu.pipeline_mode<synchronous>, transform_indices = @transform_4, window_bounds = array<i64: 2, 1>}, {transform_indices = @transform_5, window_bounds = array<i64: 2, 2, 256>}]} {
    %c0_i32 = arith.constant 0 : i32
    %0 = arith.cmpi eq, %arg0, %c0_i32 : i32
    %1 = arith.extui %0 : i1 to i32
    %c0_i32_0 = arith.constant 0 : i32
    %2 = arith.cmpi ne, %1, %c0_i32_0 : i32
    scf.if %2 {
      %cst_175 = arith.constant 0.000000e+00 : bf16
      %226 = vector.broadcast %cst_175 : bf16 to vector<8x1024xbf16>
      %c0_176 = arith.constant 0 : index
      %c0_177 = arith.constant 0 : index
      %227 = vector.load %arg7[%c0_176, %c0_177] : memref<8x1024xbf16, #tpu.memory_space<vmem>>, vector<8x1024xbf16>
      tpu.vector_store %arg7[%c0_176, %c0_177], %226 {strides = array<i32>} : memref<8x1024xbf16, #tpu.memory_space<vmem>>, vector<8x1024xbf16>,
      %cst_178 = arith.constant 0.000000e+00 : bf16
      %228 = vector.broadcast %cst_178 : bf16 to vector<32x1024xbf16>
      %c0_179 = arith.constant 0 : index
      %c0_180 = arith.constant 0 : index
      %229 = vector.load %arg8[%c0_179, %c0_180] : memref<32x1024xbf16, #tpu.memory_space<vmem>>, vector<32x1024xbf16>
      tpu.vector_store %arg8[%c0_179, %c0_180], %228 {strides = array<i32>} : memref<32x1024xbf16, #tpu.memory_space<vmem>>, vector<32x1024xbf16>,
    } else {
    }
    %3 = tpu.iota {dimensions = array<i32: 1>} : vector<1x256xi32>
    %c16_i32 = arith.constant 16 : i32
    %c0_i32_1 = arith.constant 0 : i32
    %4 = arith.cmpi eq, %c16_i32, %c0_i32_1 : i32
    %c1_i32 = arith.constant 1 : i32
    %5 = arith.select %4, %c1_i32, %c16_i32 : i32
    %6 = vector.broadcast %5 : i32 to vector<1x256xi32>
    %7 = arith.remsi %3, %6 : vector<1x256xi32>
    %c0_i32_2 = arith.constant 0 : i32
    %8 = vector.broadcast %c0_i32_2 : i32 to vector<1x256xi32>
    %9 = arith.cmpi ne, %7, %8 : vector<1x256xi32>
    %c0_i32_3 = arith.constant 0 : i32
    %10 = vector.broadcast %c0_i32_3 : i32 to vector<1x256xi32>
    %11 = arith.cmpi slt, %7, %10 : vector<1x256xi32>
    %c0_i32_4 = arith.constant 0 : i32
    %12 = arith.cmpi slt, %5, %c0_i32_4 : i32
    %13 = vector.broadcast %12 : i1 to vector<1x256xi1>
    %14 = vector.broadcast %13 : vector<1x256xi1> to vector<1x256xi1>
    %15 = arith.xori %11, %14 : vector<1x256xi1>
    %16 = arith.andi %15, %9 : vector<1x256xi1>
    %17 = vector.broadcast %5 : i32 to vector<1x256xi32>
    %18 = arith.addi %7, %17 : vector<1x256xi32>
    %19 = arith.select %16, %18, %7 : vector<1x256xi1>, vector<1x256xi32>
    %c0_i32_5 = arith.constant 0 : i32
    %20 = vector.broadcast %c0_i32_5 : i32 to vector<1x256xi32>
    %21 = arith.cmpi ne, %19, %20 : vector<1x256xi32>
    %c15_i32 = arith.constant 15 : i32
    %22 = vector.broadcast %c15_i32 : i32 to vector<1x256xi32>
    %23 = arith.cmpi ne, %19, %22 : vector<1x256xi32>
    %c0 = arith.constant 0 : index
    %c0_6 = arith.constant 0 : index
    %c0_7 = arith.constant 0 : index
    %24 = vector.load %arg1[%c0, %c0_6, %c0_7] : memref<2x4x256xbf16, #tpu.memory_space<vmem>>, vector<1x4x256xbf16>
    %25 = vector.shape_cast %24 : vector<1x4x256xbf16> to vector<4x256xbf16>
    %c0_8 = arith.constant 0 : index
    %c128 = arith.constant 128 : index
    %26 = vector.load %arg7[%c0_8, %c128] : memref<8x1024xbf16, #tpu.memory_space<vmem>>, vector<4x256xbf16>
    tpu.vector_store %arg7[%c0_8, %c128], %25 {strides = array<i32>} : memref<8x1024xbf16, #tpu.memory_space<vmem>>, vector<4x256xbf16>,
    %c1 = arith.constant 1 : index
    %c0_9 = arith.constant 0 : index
    %c0_10 = arith.constant 0 : index
    %27 = vector.load %arg1[%c1, %c0_9, %c0_10] : memref<2x4x256xbf16, #tpu.memory_space<vmem>>, vector<1x4x256xbf16>
    %28 = vector.shape_cast %27 : vector<1x4x256xbf16> to vector<4x256xbf16>
    %c0_11 = arith.constant 0 : index
    %c640 = arith.constant 640 : index
    %29 = vector.load %arg7[%c0_11, %c640] : memref<8x1024xbf16, #tpu.memory_space<vmem>>, vector<4x256xbf16>
    tpu.vector_store %arg7[%c0_11, %c640], %28 {strides = array<i32>} : memref<8x1024xbf16, #tpu.memory_space<vmem>>, vector<4x256xbf16>,
    %c0_12 = arith.constant 0 : index
    %c111 = arith.constant 111 : index
    %30 = vector.load %arg7[%c0_12, %c111] : memref<8x1024xbf16, #tpu.memory_space<vmem>>, vector<8x256xbf16>
    %cst = arith.constant 0.000000e+00 : bf16
    %31 = vector.broadcast %cst : bf16 to vector<8x256xbf16>
    %32 = vector.shape_cast %21 : vector<1x256xi1> to vector<1x256xi1>
    %33 = vector.broadcast %32 : vector<1x256xi1> to vector<8x256xi1>
    %34 = arith.select %33, %30, %31 : vector<8x256xi1>, vector<8x256xbf16>
    %c0_13 = arith.constant 0 : index
    %c0_14 = arith.constant 0 : index
    %35 = vector.load %arg9[%c0_13, %c0_14] : memref<72x512xbf16, #tpu.memory_space<vmem>>, vector<8x256xbf16>
    tpu.vector_store %arg9[%c0_13, %c0_14], %34 {strides = array<i32>} : memref<72x512xbf16, #tpu.memory_space<vmem>>, vector<8x256xbf16>,
    %c0_15 = arith.constant 0 : index
    %c112 = arith.constant 112 : index
    %36 = vector.load %arg7[%c0_15, %c112] : memref<8x1024xbf16, #tpu.memory_space<vmem>>, vector<8x256xbf16>
    %c8 = arith.constant 8 : index
    %c0_16 = arith.constant 0 : index
    %37 = vector.load %arg9[%c8, %c0_16] : memref<72x512xbf16, #tpu.memory_space<vmem>>, vector<8x256xbf16>
    tpu.vector_store %arg9[%c8, %c0_16], %36 {strides = array<i32>} : memref<72x512xbf16, #tpu.memory_space<vmem>>, vector<8x256xbf16>,
    %c0_17 = arith.constant 0 : index
    %c113 = arith.constant 113 : index
    %38 = vector.load %arg7[%c0_17, %c113] : memref<8x1024xbf16, #tpu.memory_space<vmem>>, vector<8x256xbf16>
    %cst_18 = arith.constant 0.000000e+00 : bf16
    %39 = vector.broadcast %cst_18 : bf16 to vector<8x256xbf16>
    %40 = vector.shape_cast %23 : vector<1x256xi1> to vector<1x256xi1>
    %41 = vector.broadcast %40 : vector<1x256xi1> to vector<8x256xi1>
    %42 = arith.select %41, %38, %39 : vector<8x256xi1>, vector<8x256xbf16>
    %c16 = arith.constant 16 : index
    %c0_19 = arith.constant 0 : index
    %43 = vector.load %arg9[%c16, %c0_19] : memref<72x512xbf16, #tpu.memory_space<vmem>>, vector<8x256xbf16>
    tpu.vector_store %arg9[%c16, %c0_19], %42 {strides = array<i32>} : memref<72x512xbf16, #tpu.memory_space<vmem>>, vector<8x256xbf16>,
    %c0_20 = arith.constant 0 : index
    %c127 = arith.constant 127 : index
    %44 = vector.load %arg7[%c0_20, %c127] : memref<8x1024xbf16, #tpu.memory_space<vmem>>, vector<8x256xbf16>
    %cst_21 = arith.constant 0.000000e+00 : bf16
    %45 = vector.broadcast %cst_21 : bf16 to vector<8x256xbf16>
    %46 = vector.shape_cast %21 : vector<1x256xi1> to vector<1x256xi1>
    %47 = vector.broadcast %46 : vector<1x256xi1> to vector<8x256xi1>
    %48 = arith.select %47, %44, %45 : vector<8x256xi1>, vector<8x256xbf16>
    %c24 = arith.constant 24 : index
    %c0_22 = arith.constant 0 : index
    %49 = vector.load %arg9[%c24, %c0_22] : memref<72x512xbf16, #tpu.memory_space<vmem>>, vector<8x256xbf16>
    tpu.vector_store %arg9[%c24, %c0_22], %48 {strides = array<i32>} : memref<72x512xbf16, #tpu.memory_space<vmem>>, vector<8x256xbf16>,
    %c0_23 = arith.constant 0 : index
    %c128_24 = arith.constant 128 : index
    %50 = vector.load %arg7[%c0_23, %c128_24] : memref<8x1024xbf16, #tpu.memory_space<vmem>>, vector<8x256xbf16>
    %c32 = arith.constant 32 : index
    %c0_25 = arith.constant 0 : index
    %51 = vector.load %arg9[%c32, %c0_25] : memref<72x512xbf16, #tpu.memory_space<vmem>>, vector<8x256xbf16>
    tpu.vector_store %arg9[%c32, %c0_25], %50 {strides = array<i32>} : memref<72x512xbf16, #tpu.memory_space<vmem>>, vector<8x256xbf16>,
    %c0_26 = arith.constant 0 : index
    %c129 = arith.constant 129 : index
    %52 = vector.load %arg7[%c0_26, %c129] : memref<8x1024xbf16, #tpu.memory_space<vmem>>, vector<8x256xbf16>
    %cst_27 = arith.constant 0.000000e+00 : bf16
    %53 = vector.broadcast %cst_27 : bf16 to vector<8x256xbf16>
    %54 = vector.shape_cast %23 : vector<1x256xi1> to vector<1x256xi1>
    %55 = vector.broadcast %54 : vector<1x256xi1> to vector<8x256xi1>
    %56 = arith.select %55, %52, %53 : vector<8x256xi1>, vector<8x256xbf16>
    %c40 = arith.constant 40 : index
    %c0_28 = arith.constant 0 : index
    %57 = vector.load %arg9[%c40, %c0_28] : memref<72x512xbf16, #tpu.memory_space<vmem>>, vector<8x256xbf16>
    tpu.vector_store %arg9[%c40, %c0_28], %56 {strides = array<i32>} : memref<72x512xbf16, #tpu.memory_space<vmem>>, vector<8x256xbf16>,
    %c0_29 = arith.constant 0 : index
    %c143 = arith.constant 143 : index
    %58 = vector.load %arg7[%c0_29, %c143] : memref<8x1024xbf16, #tpu.memory_space<vmem>>, vector<8x256xbf16>
    %cst_30 = arith.constant 0.000000e+00 : bf16
    %59 = vector.broadcast %cst_30 : bf16 to vector<8x256xbf16>
    %60 = vector.shape_cast %21 : vector<1x256xi1> to vector<1x256xi1>
    %61 = vector.broadcast %60 : vector<1x256xi1> to vector<8x256xi1>
    %62 = arith.select %61, %58, %59 : vector<8x256xi1>, vector<8x256xbf16>
    %c48 = arith.constant 48 : index
    %c0_31 = arith.constant 0 : index
    %63 = vector.load %arg9[%c48, %c0_31] : memref<72x512xbf16, #tpu.memory_space<vmem>>, vector<8x256xbf16>
    tpu.vector_store %arg9[%c48, %c0_31], %62 {strides = array<i32>} : memref<72x512xbf16, #tpu.memory_space<vmem>>, vector<8x256xbf16>,
    %c0_32 = arith.constant 0 : index
    %c144 = arith.constant 144 : index
    %64 = vector.load %arg7[%c0_32, %c144] : memref<8x1024xbf16, #tpu.memory_space<vmem>>, vector<8x256xbf16>
    %c56 = arith.constant 56 : index
    %c0_33 = arith.constant 0 : index
    %65 = vector.load %arg9[%c56, %c0_33] : memref<72x512xbf16, #tpu.memory_space<vmem>>, vector<8x256xbf16>
    tpu.vector_store %arg9[%c56, %c0_33], %64 {strides = array<i32>} : memref<72x512xbf16, #tpu.memory_space<vmem>>, vector<8x256xbf16>,
    %c0_34 = arith.constant 0 : index
    %c145 = arith.constant 145 : index
    %66 = vector.load %arg7[%c0_34, %c145] : memref<8x1024xbf16, #tpu.memory_space<vmem>>, vector<8x256xbf16>
    %cst_35 = arith.constant 0.000000e+00 : bf16
    %67 = vector.broadcast %cst_35 : bf16 to vector<8x256xbf16>
    %68 = vector.shape_cast %23 : vector<1x256xi1> to vector<1x256xi1>
    %69 = vector.broadcast %68 : vector<1x256xi1> to vector<8x256xi1>
    %70 = arith.select %69, %66, %67 : vector<8x256xi1>, vector<8x256xbf16>
    %c64 = arith.constant 64 : index
    %c0_36 = arith.constant 0 : index
    %71 = vector.load %arg9[%c64, %c0_36] : memref<72x512xbf16, #tpu.memory_space<vmem>>, vector<8x256xbf16>
    tpu.vector_store %arg9[%c64, %c0_36], %70 {strides = array<i32>} : memref<72x512xbf16, #tpu.memory_space<vmem>>, vector<8x256xbf16>,
    %c0_37 = arith.constant 0 : index
    %c623 = arith.constant 623 : index
    %72 = vector.load %arg7[%c0_37, %c623] : memref<8x1024xbf16, #tpu.memory_space<vmem>>, vector<8x256xbf16>
    %cst_38 = arith.constant 0.000000e+00 : bf16
    %73 = vector.broadcast %cst_38 : bf16 to vector<8x256xbf16>
    %74 = vector.shape_cast %21 : vector<1x256xi1> to vector<1x256xi1>
    %75 = vector.broadcast %74 : vector<1x256xi1> to vector<8x256xi1>
    %76 = arith.select %75, %72, %73 : vector<8x256xi1>, vector<8x256xbf16>
    %c0_39 = arith.constant 0 : index
    %c256 = arith.constant 256 : index
    %77 = vector.load %arg9[%c0_39, %c256] : memref<72x512xbf16, #tpu.memory_space<vmem>>, vector<8x256xbf16>
    tpu.vector_store %arg9[%c0_39, %c256], %76 {strides = array<i32>} : memref<72x512xbf16, #tpu.memory_space<vmem>>, vector<8x256xbf16>,
    %c0_40 = arith.constant 0 : index
    %c624 = arith.constant 624 : index
    %78 = vector.load %arg7[%c0_40, %c624] : memref<8x1024xbf16, #tpu.memory_space<vmem>>, vector<8x256xbf16>
    %c8_41 = arith.constant 8 : index
    %c256_42 = arith.constant 256 : index
    %79 = vector.load %arg9[%c8_41, %c256_42] : memref<72x512xbf16, #tpu.memory_space<vmem>>, vector<8x256xbf16>
    tpu.vector_store %arg9[%c8_41, %c256_42], %78 {strides = array<i32>} : memref<72x512xbf16, #tpu.memory_space<vmem>>, vector<8x256xbf16>,
    %c0_43 = arith.constant 0 : index
    %c625 = arith.constant 625 : index
    %80 = vector.load %arg7[%c0_43, %c625] : memref<8x1024xbf16, #tpu.memory_space<vmem>>, vector<8x256xbf16>
    %cst_44 = arith.constant 0.000000e+00 : bf16
    %81 = vector.broadcast %cst_44 : bf16 to vector<8x256xbf16>
    %82 = vector.shape_cast %23 : vector<1x256xi1> to vector<1x256xi1>
    %83 = vector.broadcast %82 : vector<1x256xi1> to vector<8x256xi1>
    %84 = arith.select %83, %80, %81 : vector<8x256xi1>, vector<8x256xbf16>
    %c16_45 = arith.constant 16 : index
    %c256_46 = arith.constant 256 : index
    %85 = vector.load %arg9[%c16_45, %c256_46] : memref<72x512xbf16, #tpu.memory_space<vmem>>, vector<8x256xbf16>
    tpu.vector_store %arg9[%c16_45, %c256_46], %84 {strides = array<i32>} : memref<72x512xbf16, #tpu.memory_space<vmem>>, vector<8x256xbf16>,
    %c0_47 = arith.constant 0 : index
    %c639 = arith.constant 639 : index
    %86 = vector.load %arg7[%c0_47, %c639] : memref<8x1024xbf16, #tpu.memory_space<vmem>>, vector<8x256xbf16>
    %cst_48 = arith.constant 0.000000e+00 : bf16
    %87 = vector.broadcast %cst_48 : bf16 to vector<8x256xbf16>
    %88 = vector.shape_cast %21 : vector<1x256xi1> to vector<1x256xi1>
    %89 = vector.broadcast %88 : vector<1x256xi1> to vector<8x256xi1>
    %90 = arith.select %89, %86, %87 : vector<8x256xi1>, vector<8x256xbf16>
    %c24_49 = arith.constant 24 : index
    %c256_50 = arith.constant 256 : index
    %91 = vector.load %arg9[%c24_49, %c256_50] : memref<72x512xbf16, #tpu.memory_space<vmem>>, vector<8x256xbf16>
    tpu.vector_store %arg9[%c24_49, %c256_50], %90 {strides = array<i32>} : memref<72x512xbf16, #tpu.memory_space<vmem>>, vector<8x256xbf16>,
    %c0_51 = arith.constant 0 : index
    %c640_52 = arith.constant 640 : index
    %92 = vector.load %arg7[%c0_51, %c640_52] : memref<8x1024xbf16, #tpu.memory_space<vmem>>, vector<8x256xbf16>
    %c32_53 = arith.constant 32 : index
    %c256_54 = arith.constant 256 : index
    %93 = vector.load %arg9[%c32_53, %c256_54] : memref<72x512xbf16, #tpu.memory_space<vmem>>, vector<8x256xbf16>
    tpu.vector_store %arg9[%c32_53, %c256_54], %92 {strides = array<i32>} : memref<72x512xbf16, #tpu.memory_space<vmem>>, vector<8x256xbf16>,
    %c0_55 = arith.constant 0 : index
    %c641 = arith.constant 641 : index
    %94 = vector.load %arg7[%c0_55, %c641] : memref<8x1024xbf16, #tpu.memory_space<vmem>>, vector<8x256xbf16>
    %cst_56 = arith.constant 0.000000e+00 : bf16
    %95 = vector.broadcast %cst_56 : bf16 to vector<8x256xbf16>
    %96 = vector.shape_cast %23 : vector<1x256xi1> to vector<1x256xi1>
    %97 = vector.broadcast %96 : vector<1x256xi1> to vector<8x256xi1>
    %98 = arith.select %97, %94, %95 : vector<8x256xi1>, vector<8x256xbf16>
    %c40_57 = arith.constant 40 : index
    %c256_58 = arith.constant 256 : index
    %99 = vector.load %arg9[%c40_57, %c256_58] : memref<72x512xbf16, #tpu.memory_space<vmem>>, vector<8x256xbf16>
    tpu.vector_store %arg9[%c40_57, %c256_58], %98 {strides = array<i32>} : memref<72x512xbf16, #tpu.memory_space<vmem>>, vector<8x256xbf16>,
    %c0_59 = arith.constant 0 : index
    %c655 = arith.constant 655 : index
    %100 = vector.load %arg7[%c0_59, %c655] : memref<8x1024xbf16, #tpu.memory_space<vmem>>, vector<8x256xbf16>
    %cst_60 = arith.constant 0.000000e+00 : bf16
    %101 = vector.broadcast %cst_60 : bf16 to vector<8x256xbf16>
    %102 = vector.shape_cast %21 : vector<1x256xi1> to vector<1x256xi1>
    %103 = vector.broadcast %102 : vector<1x256xi1> to vector<8x256xi1>
    %104 = arith.select %103, %100, %101 : vector<8x256xi1>, vector<8x256xbf16>
    %c48_61 = arith.constant 48 : index
    %c256_62 = arith.constant 256 : index
    %105 = vector.load %arg9[%c48_61, %c256_62] : memref<72x512xbf16, #tpu.memory_space<vmem>>, vector<8x256xbf16>
    tpu.vector_store %arg9[%c48_61, %c256_62], %104 {strides = array<i32>} : memref<72x512xbf16, #tpu.memory_space<vmem>>, vector<8x256xbf16>,
    %c0_63 = arith.constant 0 : index
    %c656 = arith.constant 656 : index
    %106 = vector.load %arg7[%c0_63, %c656] : memref<8x1024xbf16, #tpu.memory_space<vmem>>, vector<8x256xbf16>
    %c56_64 = arith.constant 56 : index
    %c256_65 = arith.constant 256 : index
    %107 = vector.load %arg9[%c56_64, %c256_65] : memref<72x512xbf16, #tpu.memory_space<vmem>>, vector<8x256xbf16>
    tpu.vector_store %arg9[%c56_64, %c256_65], %106 {strides = array<i32>} : memref<72x512xbf16, #tpu.memory_space<vmem>>, vector<8x256xbf16>,
    %c0_66 = arith.constant 0 : index
    %c657 = arith.constant 657 : index
    %108 = vector.load %arg7[%c0_66, %c657] : memref<8x1024xbf16, #tpu.memory_space<vmem>>, vector<8x256xbf16>
    %cst_67 = arith.constant 0.000000e+00 : bf16
    %109 = vector.broadcast %cst_67 : bf16 to vector<8x256xbf16>
    %110 = vector.shape_cast %23 : vector<1x256xi1> to vector<1x256xi1>
    %111 = vector.broadcast %110 : vector<1x256xi1> to vector<8x256xi1>
    %112 = arith.select %111, %108, %109 : vector<8x256xi1>, vector<8x256xbf16>
    %c64_68 = arith.constant 64 : index
    %c256_69 = arith.constant 256 : index
    %113 = vector.load %arg9[%c64_68, %c256_69] : memref<72x512xbf16, #tpu.memory_space<vmem>>, vector<8x256xbf16>
    tpu.vector_store %arg9[%c64_68, %c256_69], %112 {strides = array<i32>} : memref<72x512xbf16, #tpu.memory_space<vmem>>, vector<8x256xbf16>,
    %c0_70 = arith.constant 0 : index
    %c0_71 = arith.constant 0 : index
    %114 = vector.load %arg2[%c0_70, %c0_71] : memref<32x72xbf16, #tpu.memory_space<vmem>>, vector<32x72xbf16>
    %c0_72 = arith.constant 0 : index
    %c0_73 = arith.constant 0 : index
    %115 = vector.load %arg9[%c0_72, %c0_73] : memref<72x512xbf16, #tpu.memory_space<vmem>>, vector<72x512xbf16>
    %cst_74 = arith.constant dense<0.000000e+00> : vector<32x512xf32>
    %116 = tpu.matmul %114, %115, %cst_74 {dimension_numbers = #tpu.dot_dimension_numbers<[1], [0], [0], [1], [0, 0, 1, 1], [], []>} : vector<32x72xbf16>, vector<72x512xbf16>, vector<32x512xf32> -> vector<32x512xf32>
    %c0_75 = arith.constant 0 : index
    %c0_76 = arith.constant 0 : index
    %117 = vector.load %arg3[%c0_75, %c0_76] : memref<32x1xf32, #tpu.memory_space<vmem>>, vector<32x1xf32>
    %118 = vector.broadcast %117 : vector<32x1xf32> to vector<32x512xf32>
    %119 = arith.addf %116, %118 : vector<32x512xf32>
    %cst_77 = arith.constant 0.000000e+00 : f32
    %120 = vector.broadcast %cst_77 : f32 to vector<32x512xf32>
    %121 = arith.maximumf %119, %120 : vector<32x512xf32>
    %122 = arith.truncf %121 : vector<32x512xf32> to vector<32x512xbf16>
    %123 = vector.extract_strided_slice %122 {offsets = [0, 0], sizes = [32, 256], strides = [1, 1]} : vector<32x512xbf16> to vector<32x256xbf16>
    %c0_78 = arith.constant 0 : index
    %c128_79 = arith.constant 128 : index
    %124 = vector.load %arg8[%c0_78, %c128_79] : memref<32x1024xbf16, #tpu.memory_space<vmem>>, vector<32x256xbf16>
    tpu.vector_store %arg8[%c0_78, %c128_79], %123 {strides = array<i32>} : memref<32x1024xbf16, #tpu.memory_space<vmem>>, vector<32x256xbf16>,
    %125 = vector.extract_strided_slice %122 {offsets = [0, 256], sizes = [32, 256], strides = [1, 1]} : vector<32x512xbf16> to vector<32x256xbf16>
    %c0_80 = arith.constant 0 : index
    %c640_81 = arith.constant 640 : index
    %126 = vector.load %arg8[%c0_80, %c640_81] : memref<32x1024xbf16, #tpu.memory_space<vmem>>, vector<32x256xbf16>
    tpu.vector_store %arg8[%c0_80, %c640_81], %125 {strides = array<i32>} : memref<32x1024xbf16, #tpu.memory_space<vmem>>, vector<32x256xbf16>,
    %c0_82 = arith.constant 0 : index
    %c111_83 = arith.constant 111 : index
    %127 = vector.load %arg8[%c0_82, %c111_83] : memref<32x1024xbf16, #tpu.memory_space<vmem>>, vector<32x256xbf16>
    %cst_84 = arith.constant 0.000000e+00 : bf16
    %128 = vector.broadcast %cst_84 : bf16 to vector<32x256xbf16>
    %129 = vector.shape_cast %21 : vector<1x256xi1> to vector<1x256xi1>
    %130 = vector.broadcast %129 : vector<1x256xi1> to vector<32x256xi1>
    %131 = arith.select %130, %127, %128 : vector<32x256xi1>, vector<32x256xbf16>
    %c0_85 = arith.constant 0 : index
    %c0_86 = arith.constant 0 : index
    %132 = vector.load %arg10[%c0_85, %c0_86] : memref<288x512xbf16, #tpu.memory_space<vmem>>, vector<32x256xbf16>
    tpu.vector_store %arg10[%c0_85, %c0_86], %131 {strides = array<i32>} : memref<288x512xbf16, #tpu.memory_space<vmem>>, vector<32x256xbf16>,
    %c0_87 = arith.constant 0 : index
    %c112_88 = arith.constant 112 : index
    %133 = vector.load %arg8[%c0_87, %c112_88] : memref<32x1024xbf16, #tpu.memory_space<vmem>>, vector<32x256xbf16>
    %c32_89 = arith.constant 32 : index
    %c0_90 = arith.constant 0 : index
    %134 = vector.load %arg10[%c32_89, %c0_90] : memref<288x512xbf16, #tpu.memory_space<vmem>>, vector<32x256xbf16>
    tpu.vector_store %arg10[%c32_89, %c0_90], %133 {strides = array<i32>} : memref<288x512xbf16, #tpu.memory_space<vmem>>, vector<32x256xbf16>,
    %c0_91 = arith.constant 0 : index
    %c113_92 = arith.constant 113 : index
    %135 = vector.load %arg8[%c0_91, %c113_92] : memref<32x1024xbf16, #tpu.memory_space<vmem>>, vector<32x256xbf16>
    %cst_93 = arith.constant 0.000000e+00 : bf16
    %136 = vector.broadcast %cst_93 : bf16 to vector<32x256xbf16>
    %137 = vector.shape_cast %23 : vector<1x256xi1> to vector<1x256xi1>
    %138 = vector.broadcast %137 : vector<1x256xi1> to vector<32x256xi1>
    %139 = arith.select %138, %135, %136 : vector<32x256xi1>, vector<32x256xbf16>
    %c64_94 = arith.constant 64 : index
    %c0_95 = arith.constant 0 : index
    %140 = vector.load %arg10[%c64_94, %c0_95] : memref<288x512xbf16, #tpu.memory_space<vmem>>, vector<32x256xbf16>
    tpu.vector_store %arg10[%c64_94, %c0_95], %139 {strides = array<i32>} : memref<288x512xbf16, #tpu.memory_space<vmem>>, vector<32x256xbf16>,
    %c0_96 = arith.constant 0 : index
    %c127_97 = arith.constant 127 : index
    %141 = vector.load %arg8[%c0_96, %c127_97] : memref<32x1024xbf16, #tpu.memory_space<vmem>>, vector<32x256xbf16>
    %cst_98 = arith.constant 0.000000e+00 : bf16
    %142 = vector.broadcast %cst_98 : bf16 to vector<32x256xbf16>
    %143 = vector.shape_cast %21 : vector<1x256xi1> to vector<1x256xi1>
    %144 = vector.broadcast %143 : vector<1x256xi1> to vector<32x256xi1>
    %145 = arith.select %144, %141, %142 : vector<32x256xi1>, vector<32x256xbf16>
    %c96 = arith.constant 96 : index
    %c0_99 = arith.constant 0 : index
    %146 = vector.load %arg10[%c96, %c0_99] : memref<288x512xbf16, #tpu.memory_space<vmem>>, vector<32x256xbf16>
    tpu.vector_store %arg10[%c96, %c0_99], %145 {strides = array<i32>} : memref<288x512xbf16, #tpu.memory_space<vmem>>, vector<32x256xbf16>,
    %c0_100 = arith.constant 0 : index
    %c128_101 = arith.constant 128 : index
    %147 = vector.load %arg8[%c0_100, %c128_101] : memref<32x1024xbf16, #tpu.memory_space<vmem>>, vector<32x256xbf16>
    %c128_102 = arith.constant 128 : index
    %c0_103 = arith.constant 0 : index
    %148 = vector.load %arg10[%c128_102, %c0_103] : memref<288x512xbf16, #tpu.memory_space<vmem>>, vector<32x256xbf16>
    tpu.vector_store %arg10[%c128_102, %c0_103], %147 {strides = array<i32>} : memref<288x512xbf16, #tpu.memory_space<vmem>>, vector<32x256xbf16>,
    %c0_104 = arith.constant 0 : index
    %c129_105 = arith.constant 129 : index
    %149 = vector.load %arg8[%c0_104, %c129_105] : memref<32x1024xbf16, #tpu.memory_space<vmem>>, vector<32x256xbf16>
    %cst_106 = arith.constant 0.000000e+00 : bf16
    %150 = vector.broadcast %cst_106 : bf16 to vector<32x256xbf16>
    %151 = vector.shape_cast %23 : vector<1x256xi1> to vector<1x256xi1>
    %152 = vector.broadcast %151 : vector<1x256xi1> to vector<32x256xi1>
    %153 = arith.select %152, %149, %150 : vector<32x256xi1>, vector<32x256xbf16>
    %c160 = arith.constant 160 : index
    %c0_107 = arith.constant 0 : index
    %154 = vector.load %arg10[%c160, %c0_107] : memref<288x512xbf16, #tpu.memory_space<vmem>>, vector<32x256xbf16>
    tpu.vector_store %arg10[%c160, %c0_107], %153 {strides = array<i32>} : memref<288x512xbf16, #tpu.memory_space<vmem>>, vector<32x256xbf16>,
    %c0_108 = arith.constant 0 : index
    %c143_109 = arith.constant 143 : index
    %155 = vector.load %arg8[%c0_108, %c143_109] : memref<32x1024xbf16, #tpu.memory_space<vmem>>, vector<32x256xbf16>
    %cst_110 = arith.constant 0.000000e+00 : bf16
    %156 = vector.broadcast %cst_110 : bf16 to vector<32x256xbf16>
    %157 = vector.shape_cast %21 : vector<1x256xi1> to vector<1x256xi1>
    %158 = vector.broadcast %157 : vector<1x256xi1> to vector<32x256xi1>
    %159 = arith.select %158, %155, %156 : vector<32x256xi1>, vector<32x256xbf16>
    %c192 = arith.constant 192 : index
    %c0_111 = arith.constant 0 : index
    %160 = vector.load %arg10[%c192, %c0_111] : memref<288x512xbf16, #tpu.memory_space<vmem>>, vector<32x256xbf16>
    tpu.vector_store %arg10[%c192, %c0_111], %159 {strides = array<i32>} : memref<288x512xbf16, #tpu.memory_space<vmem>>, vector<32x256xbf16>,
    %c0_112 = arith.constant 0 : index
    %c144_113 = arith.constant 144 : index
    %161 = vector.load %arg8[%c0_112, %c144_113] : memref<32x1024xbf16, #tpu.memory_space<vmem>>, vector<32x256xbf16>
    %c224 = arith.constant 224 : index
    %c0_114 = arith.constant 0 : index
    %162 = vector.load %arg10[%c224, %c0_114] : memref<288x512xbf16, #tpu.memory_space<vmem>>, vector<32x256xbf16>
    tpu.vector_store %arg10[%c224, %c0_114], %161 {strides = array<i32>} : memref<288x512xbf16, #tpu.memory_space<vmem>>, vector<32x256xbf16>,
    %c0_115 = arith.constant 0 : index
    %c145_116 = arith.constant 145 : index
    %163 = vector.load %arg8[%c0_115, %c145_116] : memref<32x1024xbf16, #tpu.memory_space<vmem>>, vector<32x256xbf16>
    %cst_117 = arith.constant 0.000000e+00 : bf16
    %164 = vector.broadcast %cst_117 : bf16 to vector<32x256xbf16>
    %165 = vector.shape_cast %23 : vector<1x256xi1> to vector<1x256xi1>
    %166 = vector.broadcast %165 : vector<1x256xi1> to vector<32x256xi1>
    %167 = arith.select %166, %163, %164 : vector<32x256xi1>, vector<32x256xbf16>
    %c256_118 = arith.constant 256 : index
    %c0_119 = arith.constant 0 : index
    %168 = vector.load %arg10[%c256_118, %c0_119] : memref<288x512xbf16, #tpu.memory_space<vmem>>, vector<32x256xbf16>
    tpu.vector_store %arg10[%c256_118, %c0_119], %167 {strides = array<i32>} : memref<288x512xbf16, #tpu.memory_space<vmem>>, vector<32x256xbf16>,
    %c0_120 = arith.constant 0 : index
    %c623_121 = arith.constant 623 : index
    %169 = vector.load %arg8[%c0_120, %c623_121] : memref<32x1024xbf16, #tpu.memory_space<vmem>>, vector<32x256xbf16>
    %cst_122 = arith.constant 0.000000e+00 : bf16
    %170 = vector.broadcast %cst_122 : bf16 to vector<32x256xbf16>
    %171 = vector.shape_cast %21 : vector<1x256xi1> to vector<1x256xi1>
    %172 = vector.broadcast %171 : vector<1x256xi1> to vector<32x256xi1>
    %173 = arith.select %172, %169, %170 : vector<32x256xi1>, vector<32x256xbf16>
    %c0_123 = arith.constant 0 : index
    %c256_124 = arith.constant 256 : index
    %174 = vector.load %arg10[%c0_123, %c256_124] : memref<288x512xbf16, #tpu.memory_space<vmem>>, vector<32x256xbf16>
    tpu.vector_store %arg10[%c0_123, %c256_124], %173 {strides = array<i32>} : memref<288x512xbf16, #tpu.memory_space<vmem>>, vector<32x256xbf16>,
    %c0_125 = arith.constant 0 : index
    %c624_126 = arith.constant 624 : index
    %175 = vector.load %arg8[%c0_125, %c624_126] : memref<32x1024xbf16, #tpu.memory_space<vmem>>, vector<32x256xbf16>
    %c32_127 = arith.constant 32 : index
    %c256_128 = arith.constant 256 : index
    %176 = vector.load %arg10[%c32_127, %c256_128] : memref<288x512xbf16, #tpu.memory_space<vmem>>, vector<32x256xbf16>
    tpu.vector_store %arg10[%c32_127, %c256_128], %175 {strides = array<i32>} : memref<288x512xbf16, #tpu.memory_space<vmem>>, vector<32x256xbf16>,
    %c0_129 = arith.constant 0 : index
    %c625_130 = arith.constant 625 : index
    %177 = vector.load %arg8[%c0_129, %c625_130] : memref<32x1024xbf16, #tpu.memory_space<vmem>>, vector<32x256xbf16>
    %cst_131 = arith.constant 0.000000e+00 : bf16
    %178 = vector.broadcast %cst_131 : bf16 to vector<32x256xbf16>
    %179 = vector.shape_cast %23 : vector<1x256xi1> to vector<1x256xi1>
    %180 = vector.broadcast %179 : vector<1x256xi1> to vector<32x256xi1>
    %181 = arith.select %180, %177, %178 : vector<32x256xi1>, vector<32x256xbf16>
    %c64_132 = arith.constant 64 : index
    %c256_133 = arith.constant 256 : index
    %182 = vector.load %arg10[%c64_132, %c256_133] : memref<288x512xbf16, #tpu.memory_space<vmem>>, vector<32x256xbf16>
    tpu.vector_store %arg10[%c64_132, %c256_133], %181 {strides = array<i32>} : memref<288x512xbf16, #tpu.memory_space<vmem>>, vector<32x256xbf16>,
    %c0_134 = arith.constant 0 : index
    %c639_135 = arith.constant 639 : index
    %183 = vector.load %arg8[%c0_134, %c639_135] : memref<32x1024xbf16, #tpu.memory_space<vmem>>, vector<32x256xbf16>
    %cst_136 = arith.constant 0.000000e+00 : bf16
    %184 = vector.broadcast %cst_136 : bf16 to vector<32x256xbf16>
    %185 = vector.shape_cast %21 : vector<1x256xi1> to vector<1x256xi1>
    %186 = vector.broadcast %185 : vector<1x256xi1> to vector<32x256xi1>
    %187 = arith.select %186, %183, %184 : vector<32x256xi1>, vector<32x256xbf16>
    %c96_137 = arith.constant 96 : index
    %c256_138 = arith.constant 256 : index
    %188 = vector.load %arg10[%c96_137, %c256_138] : memref<288x512xbf16, #tpu.memory_space<vmem>>, vector<32x256xbf16>
    tpu.vector_store %arg10[%c96_137, %c256_138], %187 {strides = array<i32>} : memref<288x512xbf16, #tpu.memory_space<vmem>>, vector<32x256xbf16>,
    %c0_139 = arith.constant 0 : index
    %c640_140 = arith.constant 640 : index
    %189 = vector.load %arg8[%c0_139, %c640_140] : memref<32x1024xbf16, #tpu.memory_space<vmem>>, vector<32x256xbf16>
    %c128_141 = arith.constant 128 : index
    %c256_142 = arith.constant 256 : index
    %190 = vector.load %arg10[%c128_141, %c256_142] : memref<288x512xbf16, #tpu.memory_space<vmem>>, vector<32x256xbf16>
    tpu.vector_store %arg10[%c128_141, %c256_142], %189 {strides = array<i32>} : memref<288x512xbf16, #tpu.memory_space<vmem>>, vector<32x256xbf16>,
    %c0_143 = arith.constant 0 : index
    %c641_144 = arith.constant 641 : index
    %191 = vector.load %arg8[%c0_143, %c641_144] : memref<32x1024xbf16, #tpu.memory_space<vmem>>, vector<32x256xbf16>
    %cst_145 = arith.constant 0.000000e+00 : bf16
    %192 = vector.broadcast %cst_145 : bf16 to vector<32x256xbf16>
    %193 = vector.shape_cast %23 : vector<1x256xi1> to vector<1x256xi1>
    %194 = vector.broadcast %193 : vector<1x256xi1> to vector<32x256xi1>
    %195 = arith.select %194, %191, %192 : vector<32x256xi1>, vector<32x256xbf16>
    %c160_146 = arith.constant 160 : index
    %c256_147 = arith.constant 256 : index
    %196 = vector.load %arg10[%c160_146, %c256_147] : memref<288x512xbf16, #tpu.memory_space<vmem>>, vector<32x256xbf16>
    tpu.vector_store %arg10[%c160_146, %c256_147], %195 {strides = array<i32>} : memref<288x512xbf16, #tpu.memory_space<vmem>>, vector<32x256xbf16>,
    %c0_148 = arith.constant 0 : index
    %c655_149 = arith.constant 655 : index
    %197 = vector.load %arg8[%c0_148, %c655_149] : memref<32x1024xbf16, #tpu.memory_space<vmem>>, vector<32x256xbf16>
    %cst_150 = arith.constant 0.000000e+00 : bf16
    %198 = vector.broadcast %cst_150 : bf16 to vector<32x256xbf16>
    %199 = vector.shape_cast %21 : vector<1x256xi1> to vector<1x256xi1>
    %200 = vector.broadcast %199 : vector<1x256xi1> to vector<32x256xi1>
    %201 = arith.select %200, %197, %198 : vector<32x256xi1>, vector<32x256xbf16>
    %c192_151 = arith.constant 192 : index
    %c256_152 = arith.constant 256 : index
    %202 = vector.load %arg10[%c192_151, %c256_152] : memref<288x512xbf16, #tpu.memory_space<vmem>>, vector<32x256xbf16>
    tpu.vector_store %arg10[%c192_151, %c256_152], %201 {strides = array<i32>} : memref<288x512xbf16, #tpu.memory_space<vmem>>, vector<32x256xbf16>,
    %c0_153 = arith.constant 0 : index
    %c656_154 = arith.constant 656 : index
    %203 = vector.load %arg8[%c0_153, %c656_154] : memref<32x1024xbf16, #tpu.memory_space<vmem>>, vector<32x256xbf16>
    %c224_155 = arith.constant 224 : index
    %c256_156 = arith.constant 256 : index
    %204 = vector.load %arg10[%c224_155, %c256_156] : memref<288x512xbf16, #tpu.memory_space<vmem>>, vector<32x256xbf16>
    tpu.vector_store %arg10[%c224_155, %c256_156], %203 {strides = array<i32>} : memref<288x512xbf16, #tpu.memory_space<vmem>>, vector<32x256xbf16>,
    %c0_157 = arith.constant 0 : index
    %c657_158 = arith.constant 657 : index
    %205 = vector.load %arg8[%c0_157, %c657_158] : memref<32x1024xbf16, #tpu.memory_space<vmem>>, vector<32x256xbf16>
    %cst_159 = arith.constant 0.000000e+00 : bf16
    %206 = vector.broadcast %cst_159 : bf16 to vector<32x256xbf16>
    %207 = vector.shape_cast %23 : vector<1x256xi1> to vector<1x256xi1>
    %208 = vector.broadcast %207 : vector<1x256xi1> to vector<32x256xi1>
    %209 = arith.select %208, %205, %206 : vector<32x256xi1>, vector<32x256xbf16>
    %c256_160 = arith.constant 256 : index
    %c256_161 = arith.constant 256 : index
    %210 = vector.load %arg10[%c256_160, %c256_161] : memref<288x512xbf16, #tpu.memory_space<vmem>>, vector<32x256xbf16>
    tpu.vector_store %arg10[%c256_160, %c256_161], %209 {strides = array<i32>} : memref<288x512xbf16, #tpu.memory_space<vmem>>, vector<32x256xbf16>,
    %c0_162 = arith.constant 0 : index
    %c0_163 = arith.constant 0 : index
    %211 = vector.load %arg4[%c0_162, %c0_163] : memref<2x288xbf16, #tpu.memory_space<vmem>>, vector<2x288xbf16>
    %c0_164 = arith.constant 0 : index
    %c0_165 = arith.constant 0 : index
    %212 = vector.load %arg10[%c0_164, %c0_165] : memref<288x512xbf16, #tpu.memory_space<vmem>>, vector<288x512xbf16>
    %cst_166 = arith.constant dense<0.000000e+00> : vector<2x512xf32>
    %213 = tpu.matmul %211, %212, %cst_166 {dimension_numbers = #tpu.dot_dimension_numbers<[1], [0], [0], [1], [0, 0, 1, 1], [], []>} : vector<2x288xbf16>, vector<288x512xbf16>, vector<2x512xf32> -> vector<2x512xf32>
    %c0_167 = arith.constant 0 : index
    %c0_168 = arith.constant 0 : index
    %214 = vector.load %arg5[%c0_167, %c0_168] : memref<2x1xf32, #tpu.memory_space<vmem>>, vector<2x1xf32>
    %215 = vector.broadcast %214 : vector<2x1xf32> to vector<2x512xf32>
    %216 = arith.addf %213, %215 : vector<2x512xf32>
    %217 = math.tanh %216 : vector<2x512xf32>
    %218 = vector.extract_strided_slice %217 {offsets = [0, 0], sizes = [2, 256], strides = [1, 1]} : vector<2x512xf32> to vector<2x256xf32>
    %c0_169 = arith.constant 0 : index
    %c0_170 = arith.constant 0 : index
    %c0_171 = arith.constant 0 : index
    %219 = vector.load %arg6[%c0_169, %c0_170, %c0_171] : memref<2x2x256xf32, #tpu.memory_space<vmem>>, vector<1x2x256xf32>
    %220 = vector.shape_cast %219 : vector<1x2x256xf32> to vector<2x256xf32>
    %221 = vector.shape_cast %218 : vector<2x256xf32> to vector<1x2x256xf32>
    tpu.vector_store %arg6[%c0_169, %c0_170, %c0_171], %221 {strides = array<i32>} : memref<2x2x256xf32, #tpu.memory_space<vmem>>, vector<1x2x256xf32>,
    %222 = vector.extract_strided_slice %217 {offsets = [0, 256], sizes = [2, 256], strides = [1, 1]} : vector<2x512xf32> to vector<2x256xf32>
    %c1_172 = arith.constant 1 : index
    %c0_173 = arith.constant 0 : index
    %c0_174 = arith.constant 0 : index
    %223 = vector.load %arg6[%c1_172, %c0_173, %c0_174] : memref<2x2x256xf32, #tpu.memory_space<vmem>>, vector<1x2x256xf32>
    %224 = vector.shape_cast %223 : vector<1x2x256xf32> to vector<2x256xf32>
    %225 = vector.shape_cast %222 : vector<2x256xf32> to vector<1x2x256xf32>
    tpu.vector_store %arg6[%c1_172, %c0_173, %c0_174], %225 {strides = array<i32>} : memref<2x2x256xf32, #tpu.memory_space<vmem>>, vector<1x2x256xf32>,
    return
  }
  func.func @transform_0(%arg0: i32) -> (i32, i32, i32) {
    %c0_i32 = arith.constant 0 : i32
    %c0_i32_0 = arith.constant 0 : i32
    %c0_i32_1 = arith.constant 0 : i32
    return %arg0, %c0_i32, %c0_i32_0 : i32, i32, i32
  }
  func.func @transform_1(%arg0: i32) -> (i32, i32) {
    %c0_i32 = arith.constant 0 : i32
    %c0_i32_0 = arith.constant 0 : i32
    %c0_i32_1 = arith.constant 0 : i32
    return %c0_i32, %c0_i32_0 : i32, i32
  }
  func.func @transform_2(%arg0: i32) -> (i32, i32) {
    %c0_i32 = arith.constant 0 : i32
    %c0_i32_0 = arith.constant 0 : i32
    %c0_i32_1 = arith.constant 0 : i32
    return %c0_i32, %c0_i32_0 : i32, i32
  }
  func.func @transform_3(%arg0: i32) -> (i32, i32) {
    %c0_i32 = arith.constant 0 : i32
    %c0_i32_0 = arith.constant 0 : i32
    %c0_i32_1 = arith.constant 0 : i32
    return %c0_i32, %c0_i32_0 : i32, i32
  }
  func.func @transform_4(%arg0: i32) -> (i32, i32) {
    %c0_i32 = arith.constant 0 : i32
    %c0_i32_0 = arith.constant 0 : i32
    %c0_i32_1 = arith.constant 0 : i32
    return %c0_i32, %c0_i32_0 : i32, i32
  }
  func.func @transform_5(%arg0: i32) -> (i32, i32, i32) {
    %c0_i32 = arith.constant 0 : i32
    %c0_i32_0 = arith.constant 0 : i32
    %c0_i32_1 = arith.constant 0 : i32
    return %arg0, %c0_i32, %c0_i32_0 : i32, i32, i32
  }
}

</mosaic_0001>

<llo_original>
// kernel: tpu_custom_call.1
$region0: #{tpu_custom_call.1}
  #allocation0 [shape = 'u32[]', space=smem, size = 0x4, offset = 0x4, fixed_abs, tag = 'smem constant byte address 0x4 - core index']
  #allocation1 [shape = 'u32[144,128]{1,0:T(1,128)}', space=vmem, size = 0x12000, scoped, tag = 'internal scratch']
  #allocation2 [shape = 'bf16[8,1024]{1,0:T(8,128)(2,1)}', space=vmem, size = 0x4000, scoped, tag = 'scratch operand']
  #allocation3 [shape = 'bf16[32,1024]{1,0:T(8,128)(2,1)}', space=vmem, size = 0x10000, scoped, tag = 'scratch operand']
  #allocation4 [shape = 'bf16[72,512]{1,0:T(8,128)(2,1)}', space=vmem, size = 0x12000, scoped, tag = 'scratch operand']
  #allocation5 [shape = 'bf16[288,512]{1,0:T(8,128)(2,1)}', space=vmem, size = 0x48000, scoped, tag = 'scratch operand']
  %s0 = inlined_call_operand.vmem [shape: bf16[2,4,256], index: 0, kind: input, shape index: {}]
  %s1 = inlined_call_operand.vmem [shape: bf16[32,72], index: 1, kind: input, shape index: {}]
  %s2 = inlined_call_operand.vmem [shape: f32[32,1], index: 2, kind: input, shape index: {}]
  %s3 = inlined_call_operand.vmem [shape: bf16[2,288], index: 3, kind: input, shape index: {}]
  %s4 = inlined_call_operand.vmem [shape: f32[2,1], index: 4, kind: input, shape index: {}]
  %s5 = inlined_call_operand.hbm [shape: f32[2,2,256], index: 5, kind: output, shape index: {}]
  %s6 = sld [smem:[#allocation0]]
  $region34: #{tpu_custom_call.1} parent=0
    _
  %s8 = ssub.s32 1, %s6
  %s9 = scalar_select 0, %s8, %s6
  $region1: #{tpu_custom_call.1} parent=0
    #allocation6 [shape = 'u8[4096]{0}', space=vmem, size = 0x1000, scoped, tag = 'output window, operand 0, single buffered']
    #allocation7 [shape = 's32[1]{0}', space=sflag, size = 0x4, scoped, tag = 'scoped memory for tpu_custom_call.1']
    %10 = vsyncpa [#allocation7], 0
    // Predicated region
    $region2: #{tpu_custom_call.1} parent=1 // pred_check
      _
    $region3: #{tpu_custom_call.1} parent=1 // pred_check_branch
      %12 = sbr.rel (0) target = $region5
    $region4: #{tpu_custom_call.1} parent=1 // pred_region
      _
    $region5: #{tpu_custom_call.1} parent=1 // pred_fallthru
      _
    // Predicated region
    $region6: #{tpu_custom_call.1} parent=1 // pred_check
      _
    $region7: #{tpu_custom_call.1} parent=1 // pred_check_branch
      %14 = sbr.rel (0) target = $region9
    $region8: #{tpu_custom_call.1} parent=1 // pred_region
      _
    $region9: #{tpu_custom_call.1} parent=1 // pred_fallthru
      _
    // Predicated region
    $region10: #{tpu_custom_call.1} parent=1 // pred_check
      _
    $region11: #{tpu_custom_call.1} parent=1 // pred_check_branch
      %16 = sbr.rel (0) target = $region13
    $region12: #{tpu_custom_call.1} parent=1 // pred_region
      _
    $region13: #{tpu_custom_call.1} parent=1 // pred_fallthru
      _
    // Predicated region
    $region14: #{tpu_custom_call.1} parent=1 // pred_check
      _
    $region15: #{tpu_custom_call.1} parent=1 // pred_check_branch
      %18 = sbr.rel (0) target = $region17
    $region16: #{tpu_custom_call.1} parent=1 // pred_region
      _
    $region17: #{tpu_custom_call.1} parent=1 // pred_fallthru
      _
    // Predicated region
    $region18: #{tpu_custom_call.1} parent=1 // pred_check
      _
    $region19: #{tpu_custom_call.1} parent=1 // pred_check_branch
      %20 = sbr.rel (0) target = $region21
    $region20: #{tpu_custom_call.1} parent=1 // pred_region
      _
    $region21: #{tpu_custom_call.1} parent=1 // pred_fallthru
      _
    %p24 = scmp.eq.s32.totalorder 0, 0
    // Predicated region
    $region22: #{tpu_custom_call.1} parent=1 // pred_check
      %p25 = pneg %p24
    $region23: #{tpu_custom_call.1} parent=1 // pred_check_branch
      %27 = sbr.rel (%p25) target = $region25
    $region24: #{tpu_custom_call.1} parent=1 // pred_region
      %28 = vst [vmem:[#allocation2] sm:$0xff] 0
      %29 = vst [vmem:[#allocation2 + $0x8] sm:$0xff] 0
      %30 = vst [vmem:[#allocation2 + $0x10] sm:$0xff] 0
      %31 = vst [vmem:[#allocation2 + $0x18] sm:$0xff] 0
      %32 = vst [vmem:[#allocation3] sm:$0xff] 0
      %33 = vst [vmem:[#allocation3 + $0x8] sm:$0xff] 0
      %34 = vst [vmem:[#allocation3 + $0x10] sm:$0xff] 0
      %35 = vst [vmem:[#allocation3 + $0x18] sm:$0xff] 0
      %36 = vst [vmem:[#allocation3 + $0x20] sm:$0xff] 0
      %37 = vst [vmem:[#allocation3 + $0x28] sm:$0xff] 0
      %38 = vst [vmem:[#allocation3 + $0x30] sm:$0xff] 0
      %39 = vst [vmem:[#allocation3 + $0x38] sm:$0xff] 0
      %40 = vst [vmem:[#allocation3 + $0x40] sm:$0xff] 0
      %41 = vst [vmem:[#allocation3 + $0x48] sm:$0xff] 0
      %42 = vst [vmem:[#allocation3 + $0x50] sm:$0xff] 0
      %43 = vst [vmem:[#allocation3 + $0x58] sm:$0xff] 0
      %44 = vst [vmem:[#allocation3 + $0x60] sm:$0xff] 0
      %45 = vst [vmem:[#allocation3 + $0x68] sm:$0xff] 0
      %46 = vst [vmem:[#allocation3 + $0x70] sm:$0xff] 0
      %47 = vst [vmem:[#allocation3 + $0x78] sm:$0xff] 0
    $region25: #{tpu_custom_call.1} parent=1 // pred_fallthru
      _
    %v48 = vlaneseq
    %v49 = vand.u32 %v48, 127
    %v50 = vadd.s32 %v49, 128
    %vm51 = vcmp.lt.s32.totalorder %v49, 0
    %v52 = vsub.s32 0, %v49
    %v53 = vsel %vm51, %v52, %v49
    %v54 = vshrl.u32 %v53, 4
    %v55 = vand.u32 %v53, 15
    %v56 = vsub.s32 0, %v55
    %v57 = vsel %vm51, %v56, %v55
    %vm58 = vcmp.lt.s32.totalorder %v50, 0
    %v59 = vsub.s32 0, %v50
    %v60 = vsel %vm58, %v59, %v50
    %v61 = vshrl.u32 %v60, 4
    %v62 = vand.u32 %v60, 15
    %v63 = vsub.s32 0, %v62
    %v64 = vsel %vm58, %v63, %v62
    %vm65 = vcmp.ne.s32.totalorder %v57, 0
    %vm66 = vcmp.ne.s32.totalorder %v64, 0
    %vm67 = vcmp.lt.s32.totalorder %v57, 0
    %vm68 = vcmp.lt.s32.totalorder %v64, 0
    %vm69 = vmand %vm67, %vm65
    %vm70 = vmand %vm68, %vm66
    %v71 = vadd.s32 %v57, 16
    %v72 = vadd.s32 %v64, 16
    %v73 = vsel %vm69, %v71, %v57
    %v74 = vsel %vm70, %v72, %v64
    %vm75 = vcmp.ne.s32.totalorder %v73, 0
    %vm76 = vcmp.ne.s32.totalorder %v74, 0
    %vm77 = vcmp.ne.s32.totalorder %v73, 15
    %vm78 = vcmp.ne.s32.totalorder %v74, 15
    %v79 = vld [vmem:[%s0] sm:$0xf]
    %v82 = vunpack.c.l.s4 1983009808
    %v83 = vunpack.c.0.s8 %v82
    %v84 = vlaneseq
    %v85 = vshrl.u32 %v84, 7
    %v86 = vsub.s32 %v83, %v85
    %v87 = vrot.slane %v79, %v86
    %89 = vst [vmem:[#allocation2 + $0x4] sm:$0x33] %v87
    %s90 = scalar_lea.vmem %s0, 4
    %v91 = vld [vmem:[%s90] sm:$0xf]
    %v94 = vunpack.c.l.s4 1983009808
    %v95 = vunpack.c.0.s8 %v94
    %v96 = vlaneseq
    %v97 = vshrl.u32 %v96, 7
    %v98 = vsub.s32 %v95, %v97
    %v99 = vrot.slane %v91, %v98
    %101 = vst [vmem:[#allocation2 + $0x14] sm:$0x33] %v99
    %v102 = vld [vmem:[#allocation2] sm:$0xff]
    %v103 = vld [vmem:[#allocation2 + $0x8] sm:$0xf]
    %v104 = vsel %vm75, 1, 0
    %v105 = vsel %vm76, 1, 0
    %vm106 = vcmp.eq.s32.totalorder %v104, 1
    %vm107 = vcmp.eq.s32.totalorder %v105, 1
    %vm108 = vmpackc.low %vm107, %vm106
    %v109 = vsel %vm108, 65537, 0
    %110 = vrot.lane.b32.xlu0 %v109, 111
    %v111 = vpop.permute.xlu0 %110
    %v112 = vrot.slane %v111, 4
    %vm113 = vcmask 908288
    %v114 = vsel %vm113, %v112, %v111
    %vm115 = vcmp.ne.s16.totalorder %v114, 0
    %vm116 = vcmp.ne.s16.totalorder %v112, 0
    %v117 = vsel %vm115, %v102, 0
    %v118 = vsel %vm116, %v103, 0
    %121 = vrot.lane.b32.xlu0 %v117, 17
    %v122 = vpop.permute.xlu0 %121
    %123 = vrot.lane.b32.xlu0 %v118, 17
    %v124 = vpop.permute.xlu0 %123
    %v125 = vrot.slane %v122, 4
    %v126 = vrot.slane %v124, 4
    %vm127 = vcmask 1043456
    %v128 = vsel %vm127, %v125, %v126
    %vm129 = vcmask 138240
    %v130 = vsel %vm129, %v122, %v128
    %132 = vst [vmem:[#allocation4] sm:$0xff] %v130
    %v133 = vld [vmem:[#allocation2] sm:$0xff]
    %v134 = vld [vmem:[#allocation2 + $0x8] sm:$0xf]
    %137 = vrot.lane.b32.xlu0 %v133, 16
    %v138 = vpop.permute.xlu0 %137
    %139 = vrot.lane.b32.xlu0 %v134, 16
    %v140 = vpop.permute.xlu0 %139
    %v141 = vrot.slane %v138, 4
    %v142 = vrot.slane %v140, 4
    %v143 = vsel %vm127, %v141, %v142
    %vm144 = vcmask 130048
    %v145 = vsel %vm144, %v138, %v143
    %147 = vst [vmem:[#allocation4 + $0x10] sm:$0xff] %v145
    %v148 = vld [vmem:[#allocation2] sm:$0xff]
    %v149 = vld [vmem:[#allocation2 + $0x8] sm:$0xf]
    %v150 = vsel %vm77, 1, 0
    %v151 = vsel %vm78, 1, 0
    %vm152 = vcmp.eq.s32.totalorder %v150, 1
    %vm153 = vcmp.eq.s32.totalorder %v151, 1
    %vm154 = vmpackc.low %vm153, %vm152
    %v155 = vsel %vm154, 65537, 0
    %156 = vrot.lane.b32.xlu0 %v155, 113
    %v157 = vpop.permute.xlu0 %156
    %v158 = vrot.slane %v157, 4
    %vm159 = vcmask 924672
    %v160 = vsel %vm159, %v158, %v157
    %vm161 = vcmp.ne.s16.totalorder %v160, 0
    %vm162 = vcmp.ne.s16.totalorder %v158, 0
    %v163 = vsel %vm161, %v148, 0
    %v164 = vsel %vm162, %v149, 0
    %167 = vrot.lane.b32.xlu0 %v163, 15
    %v168 = vpop.permute.xlu0 %167
    %169 = vrot.lane.b32.xlu0 %v164, 15
    %v170 = vpop.permute.xlu0 %169
    %v171 = vrot.slane %v168, 4
    %v172 = vrot.slane %v170, 4
    %v173 = vsel %vm127, %v171, %v172
    %vm174 = vcmask 121856
    %v175 = vsel %vm174, %v168, %v173
    %177 = vst [vmem:[#allocation4 + $0x20] sm:$0xff] %v175
    %v178 = vld [vmem:[#allocation2] sm:$0xff]
    %v179 = vld [vmem:[#allocation2 + $0x8] sm:$0xf]
    %180 = vrot.lane.b32.xlu0 %v109, 127
    %v181 = vpop.permute.xlu0 %180
    %v182 = vrot.slane %v181, 4
    %vm183 = vcmask 1039360
    %v184 = vsel %vm183, %v182, %v181
    %vm185 = vcmp.ne.s16.totalorder %v184, 0
    %vm186 = vcmp.ne.s16.totalorder %v182, 0
    %v187 = vsel %vm185, %v178, 0
    %v188 = vsel %vm186, %v179, 0
    %191 = vrot.lane.b32.xlu0 %v187, 1
    %v192 = vpop.permute.xlu0 %191
    %193 = vrot.lane.b32.xlu0 %v188, 1
    %v194 = vpop.permute.xlu0 %193
    %v195 = vrot.slane %v192, 4
    %v196 = vrot.slane %v194, 4
    %v197 = vsel %vm127, %v195, %v196
    %vm198 = vcmask 7168
    %v199 = vsel %vm198, %v192, %v197
    %201 = vst [vmem:[#allocation4 + $0x30] sm:$0xff] %v199
    %v202 = vld [vmem:[#allocation2 + $0x4] sm:$0xff]
    %203 = vst [vmem:[#allocation4 + $0x40] sm:$0xff] %v202
    %v204 = vld [vmem:[#allocation2 + $0x4] sm:$0xff]
    %v205 = vld [vmem:[#allocation2 + $0xc] sm:$0xf]
    %206 = vrot.lane.b32.xlu0 %v155, 1
    %v207 = vpop.permute.xlu0 %206
    %v208 = vrot.slane %v207, 4
    %v209 = vsel %vm198, %v208, %v207
    %vm210 = vcmp.ne.s16.totalorder %v209, 0
    %vm211 = vcmp.ne.s16.totalorder %v208, 0
    %v212 = vsel %vm210, %v204, 0
    %v213 = vsel %vm211, %v205, 0
    %216 = vrot.lane.b32.xlu0 %v212, 127
    %v217 = vpop.permute.xlu0 %216
    %218 = vrot.lane.b32.xlu0 %v213, 127
    %v219 = vpop.permute.xlu0 %218
    %v220 = vrot.slane %v217, 4
    %v221 = vrot.slane %v219, 4
    %v222 = vsel %vm127, %v220, %v221
    %v223 = vsel %vm183, %v217, %v222
    %225 = vst [vmem:[#allocation4 + $0x50] sm:$0xff] %v223
    %v226 = vld [vmem:[#allocation2 + $0x4] sm:$0xff]
    %v227 = vld [vmem:[#allocation2 + $0xc] sm:$0xf]
    %228 = vrot.lane.b32.xlu0 %v109, 15
    %v229 = vpop.permute.xlu0 %228
    %v230 = vrot.slane %v229, 4
    %v231 = vsel %vm174, %v230, %v229
    %vm232 = vcmp.ne.s16.totalorder %v231, 0
    %vm233 = vcmp.ne.s16.totalorder %v230, 0
    %v234 = vsel %vm232, %v226, 0
    %v235 = vsel %vm233, %v227, 0
    %238 = vrot.lane.b32.xlu0 %v234, 113
    %v239 = vpop.permute.xlu0 %238
    %240 = vrot.lane.b32.xlu0 %v235, 113
    %v241 = vpop.permute.xlu0 %240
    %v242 = vrot.slane %v239, 4
    %v243 = vrot.slane %v241, 4
    %v244 = vsel %vm127, %v242, %v243
    %v245 = vsel %vm159, %v239, %v244
    %247 = vst [vmem:[#allocation4 + $0x60] sm:$0xff] %v245
    %v248 = vld [vmem:[#allocation2 + $0x4] sm:$0xff]
    %v249 = vld [vmem:[#allocation2 + $0xc] sm:$0xf]
    %252 = vrot.lane.b32.xlu0 %v248, 112
    %v253 = vpop.permute.xlu0 %252
    %254 = vrot.lane.b32.xlu0 %v249, 112
    %v255 = vpop.permute.xlu0 %254
    %v256 = vrot.slane %v253, 4
    %v257 = vrot.slane %v255, 4
    %v258 = vsel %vm127, %v256, %v257
    %vm259 = vcmask 916480
    %v260 = vsel %vm259, %v253, %v258
    %262 = vst [vmem:[#allocation4 + $0x70] sm:$0xff] %v260
    %v263 = vld [vmem:[#allocation2 + $0x4] sm:$0xff]
    %v264 = vld [vmem:[#allocation2 + $0xc] sm:$0xf]
    %265 = vrot.lane.b32.xlu0 %v155, 17
    %v266 = vpop.permute.xlu0 %265
    %v267 = vrot.slane %v266, 4
    %v268 = vsel %vm129, %v267, %v266
    %vm269 = vcmp.ne.s16.totalorder %v268, 0
    %vm270 = vcmp.ne.s16.totalorder %v267, 0
    %v271 = vsel %vm269, %v263, 0
    %v272 = vsel %vm270, %v264, 0
    %275 = vrot.lane.b32.xlu0 %v271, 111
    %v276 = vpop.permute.xlu0 %275
    %277 = vrot.lane.b32.xlu0 %v272, 111
    %v278 = vpop.permute.xlu0 %277
    %v279 = vrot.slane %v276, 4
    %v280 = vrot.slane %v278, 4
    %v281 = vsel %vm127, %v279, %v280
    %v282 = vsel %vm113, %v276, %v281
    %284 = vst [vmem:[#allocation4 + $0x80] sm:$0xff] %v282
    %v285 = vld [vmem:[#allocation2 + $0x10] sm:$0xff]
    %v286 = vld [vmem:[#allocation2 + $0x18] sm:$0xf]
    %v287 = vsel %vm115, %v285, 0
    %v288 = vsel %vm116, %v286, 0
    %291 = vrot.lane.b32.xlu0 %v287, 17
    %v292 = vpop.permute.xlu0 %291
    %293 = vrot.lane.b32.xlu0 %v288, 17
    %v294 = vpop.permute.xlu0 %293
    %v295 = vrot.slane %v292, 4
    %v296 = vrot.slane %v294, 4
    %v297 = vsel %vm127, %v295, %v296
    %v298 = vsel %vm129, %v292, %v297
    %300 = vst [vmem:[#allocation4 + $0x8] sm:$0xff] %v298
    %v301 = vld [vmem:[#allocation2 + $0x10] sm:$0xff]
    %v302 = vld [vmem:[#allocation2 + $0x18] sm:$0xf]
    %305 = vrot.lane.b32.xlu0 %v301, 16
    %v306 = vpop.permute.xlu0 %305
    %307 = vrot.lane.b32.xlu0 %v302, 16
    %v308 = vpop.permute.xlu0 %307
    %v309 = vrot.slane %v306, 4
    %v310 = vrot.slane %v308, 4
    %v311 = vsel %vm127, %v309, %v310
    %v312 = vsel %vm144, %v306, %v311
    %314 = vst [vmem:[#allocation4 + $0x18] sm:$0xff] %v312
    %v315 = vld [vmem:[#allocation2 + $0x10] sm:$0xff]
    %v316 = vld [vmem:[#allocation2 + $0x18] sm:$0xf]
    %v317 = vsel %vm161, %v315, 0
    %v318 = vsel %vm162, %v316, 0
    %321 = vrot.lane.b32.xlu0 %v317, 15
    %v322 = vpop.permute.xlu0 %321
    %323 = vrot.lane.b32.xlu0 %v318, 15
    %v324 = vpop.permute.xlu0 %323
    %v325 = vrot.slane %v322, 4
    %v326 = vrot.slane %v324, 4
    %v327 = vsel %vm127, %v325, %v326
    %v328 = vsel %vm174, %v322, %v327
    %330 = vst [vmem:[#allocation4 + $0x28] sm:$0xff] %v328
    %v331 = vld [vmem:[#allocation2 + $0x10] sm:$0xff]
    %v332 = vld [vmem:[#allocation2 + $0x18] sm:$0xf]
    %v333 = vsel %vm185, %v331, 0
    %v334 = vsel %vm186, %v332, 0
    %337 = vrot.lane.b32.xlu0 %v333, 1
    %v338 = vpop.permute.xlu0 %337
    %339 = vrot.lane.b32.xlu0 %v334, 1
    %v340 = vpop.permute.xlu0 %339
    %v341 = vrot.slane %v338, 4
    %v342 = vrot.slane %v340, 4
    %v343 = vsel %vm127, %v341, %v342
    %v344 = vsel %vm198, %v338, %v343
    %346 = vst [vmem:[#allocation4 + $0x38] sm:$0xff] %v344
    %v347 = vld [vmem:[#allocation2 + $0x14] sm:$0xff]
    %348 = vst [vmem:[#allocation4 + $0x48] sm:$0xff] %v347
    %v349 = vld [vmem:[#allocation2 + $0x14] sm:$0xff]
    %v350 = vld [vmem:[#allocation2 + $0x1c] sm:$0xf]
    %v351 = vsel %vm210, %v349, 0
    %v352 = vsel %vm211, %v350, 0
    %355 = vrot.lane.b32.xlu0 %v351, 127
    %v356 = vpop.permute.xlu0 %355
    %357 = vrot.lane.b32.xlu0 %v352, 127
    %v358 = vpop.permute.xlu0 %357
    %v359 = vrot.slane %v356, 4
    %v360 = vrot.slane %v358, 4
    %v361 = vsel %vm127, %v359, %v360
    %v362 = vsel %vm183, %v356, %v361
    %364 = vst [vmem:[#allocation4 + $0x58] sm:$0xff] %v362
    %v365 = vld [vmem:[#allocation2 + $0x14] sm:$0xff]
    %v366 = vld [vmem:[#allocation2 + $0x1c] sm:$0xf]
    %v367 = vsel %vm232, %v365, 0
    %v368 = vsel %vm233, %v366, 0
    %371 = vrot.lane.b32.xlu0 %v367, 113
    %v372 = vpop.permute.xlu0 %371
    %373 = vrot.lane.b32.xlu0 %v368, 113
    %v374 = vpop.permute.xlu0 %373
    %v375 = vrot.slane %v372, 4
    %v376 = vrot.slane %v374, 4
    %v377 = vsel %vm127, %v375, %v376
    %v378 = vsel %vm159, %v372, %v377
    %380 = vst [vmem:[#allocation4 + $0x68] sm:$0xff] %v378
    %v381 = vld [vmem:[#allocation2 + $0x14] sm:$0xff]
    %v382 = vld [vmem:[#allocation2 + $0x1c] sm:$0xf]
    %385 = vrot.lane.b32.xlu0 %v381, 112
    %v386 = vpop.permute.xlu0 %385
    %387 = vrot.lane.b32.xlu0 %v382, 112
    %v388 = vpop.permute.xlu0 %387
    %v389 = vrot.slane %v386, 4
    %v390 = vrot.slane %v388, 4
    %v391 = vsel %vm127, %v389, %v390
    %v392 = vsel %vm259, %v386, %v391
    %394 = vst [vmem:[#allocation4 + $0x78] sm:$0xff] %v392
    %v395 = vld [vmem:[#allocation2 + $0x14] sm:$0xff]
    %v396 = vld [vmem:[#allocation2 + $0x1c] sm:$0xf]
    %v397 = vsel %vm269, %v395, 0
    %v398 = vsel %vm270, %v396, 0
    %401 = vrot.lane.b32.xlu0 %v397, 111
    %v402 = vpop.permute.xlu0 %401
    %403 = vrot.lane.b32.xlu0 %v398, 111
    %v404 = vpop.permute.xlu0 %403
    %v405 = vrot.slane %v402, 4
    %v406 = vrot.slane %v404, 4
    %v407 = vsel %vm127, %v405, %v406
    %v408 = vsel %vm113, %v402, %v407
    %410 = vst [vmem:[#allocation4 + $0x88] sm:$0xff] %v408
    %v411 = vld [vmem:[%s1] sm:$0xf]
    %v412 = vld [vmem:[%s1 + $0x4] sm:$0xf]
    %v413 = vld [vmem:[%s1 + $0x8] sm:$0xf]
    %v414 = vld [vmem:[%s1 + $0xc] sm:$0xf]
    %v415 = vld [vmem:[#allocation4] sm:$0xff]
    %v416 = vld [vmem:[#allocation4 + $0x8] sm:$0xff]
    %v417 = vld [vmem:[#allocation4 + $0x10] sm:$0xff]
    %v418 = vld [vmem:[#allocation4 + $0x18] sm:$0xff]
    %v419 = vld [vmem:[#allocation4 + $0x20] sm:$0xff]
    %v420 = vld [vmem:[#allocation4 + $0x28] sm:$0xff]
    %v421 = vld [vmem:[#allocation4 + $0x30] sm:$0xff]
    %v422 = vld [vmem:[#allocation4 + $0x38] sm:$0xff]
    %v423 = vld [vmem:[#allocation4 + $0x40] sm:$0xff]
    %v424 = vld [vmem:[#allocation4 + $0x48] sm:$0xff]
    %v425 = vld [vmem:[#allocation4 + $0x50] sm:$0xff]
    %v426 = vld [vmem:[#allocation4 + $0x58] sm:$0xff]
    %v427 = vld [vmem:[#allocation4 + $0x60] sm:$0xff]
    %v428 = vld [vmem:[#allocation4 + $0x68] sm:$0xff]
    %v429 = vld [vmem:[#allocation4 + $0x70] sm:$0xff]
    %v430 = vld [vmem:[#allocation4 + $0x78] sm:$0xff]
    %v431 = vld [vmem:[#allocation4 + $0x80] sm:$0xff]
    %v432 = vld [vmem:[#allocation4 + $0x88] sm:$0xff]
    %v433 = vld [vmem:[%s2] sm:$0xff]
    %v434 = vld [vmem:[%s2 + $0x8] sm:$0xff]
    %v435 = vld [vmem:[%s2 + $0x10] sm:$0xff]
    %v436 = vld [vmem:[%s2 + $0x18] sm:$0xff]
    %438 = vset.pattern.permute.xlu0 0
    %439 = vperm.xlu0 %438, %v433
    %v440 = vpop.permute.xlu0 %439
    %443 = vset.pattern.permute.xlu0 0
    %444 = vperm.xlu0 %443, %v434
    %v445 = vpop.permute.xlu0 %444
    %448 = vset.pattern.permute.xlu0 0
    %449 = vperm.xlu0 %448, %v435
    %v450 = vpop.permute.xlu0 %449
    %453 = vset.pattern.permute.xlu0 0
    %454 = vperm.xlu0 %453, %v436
    %v455 = vpop.permute.xlu0 %454
    %v461 = vunpack.c.l.b16 %v411
    %v462 = vunpack.c.l.b16 %v412
    %v463 = vunpack.c.l.b16 %v413
    %v464 = vunpack.c.l.b16 %v414
    %v465 = vpack.c.b16 %v462, %v461
    %v466 = vpack.c.b16 %v464, %v463
    %v485 = vunpack.c.l.b16 %v415
    %v486 = vunpack.c.h.b16 %v415
    %v487 = vunpack.c.l.b16 %v416
    %v488 = vunpack.c.h.b16 %v416
    %v489 = vunpack.c.l.b16 %v417
    %v490 = vunpack.c.h.b16 %v417
    %v491 = vunpack.c.l.b16 %v418
    %v492 = vunpack.c.h.b16 %v418
    %v493 = vunpack.c.l.b16 %v419
    %v494 = vunpack.c.h.b16 %v419
    %v495 = vunpack.c.l.b16 %v420
    %v496 = vunpack.c.h.b16 %v420
    %v497 = vunpack.c.l.b16 %v421
    %v498 = vunpack.c.h.b16 %v421
    %v499 = vunpack.c.l.b16 %v422
    %v500 = vunpack.c.h.b16 %v422
    %v501 = vunpack.c.l.b16 %v423
    %v502 = vunpack.c.h.b16 %v423
    %v503 = vunpack.c.l.b16 %v424
    %v504 = vunpack.c.h.b16 %v424
    %v505 = vunpack.c.l.b16 %v425
    %v506 = vunpack.c.h.b16 %v425
    %v507 = vunpack.c.l.b16 %v426
    %v508 = vunpack.c.h.b16 %v426
    %v509 = vunpack.c.l.b16 %v427
    %v510 = vunpack.c.h.b16 %v427
    %v511 = vunpack.c.l.b16 %v428
    %v512 = vunpack.c.h.b16 %v428
    %v513 = vunpack.c.l.b16 %v429
    %v514 = vunpack.c.h.b16 %v429
    %v515 = vunpack.c.l.b16 %v430
    %v516 = vunpack.c.h.b16 %v430
    %v517 = vunpack.c.l.b16 %v431
    %v518 = vunpack.c.h.b16 %v431
    %v519 = vunpack.c.l.b16 %v432
    %v520 = vunpack.c.h.b16 %v432
    %v521 = vpack.c.b16 %v489, %v485
    %v522 = vpack.c.b16 %v490, %v486
    %v523 = vpack.c.b16 %v491, %v487
    %v524 = vpack.c.b16 %v492, %v488
    %v525 = vpack.c.b16 %v497, %v493
    %v526 = vpack.c.b16 %v498, %v494
    %v527 = vpack.c.b16 %v499, %v495
    %v528 = vpack.c.b16 %v500, %v496
    %v529 = vpack.c.b16 %v505, %v501
    %v530 = vpack.c.b16 %v506, %v502
    %v531 = vpack.c.b16 %v507, %v503
    %v532 = vpack.c.b16 %v508, %v504
    %v533 = vpack.c.b16 %v513, %v509
    %v534 = vpack.c.b16 %v514, %v510
    %v535 = vpack.c.b16 %v515, %v511
    %v536 = vpack.c.b16 %v516, %v512
    %v537 = vpack.c.b16 %v517, %v517
    %v538 = vpack.c.b16 %v518, %v518
    %v539 = vpack.c.b16 %v519, %v519
    %v540 = vpack.c.b16 %v520, %v520
    %vm557 = vcmask 588800
    %v559 = vsel %vm557, %v465, 0
    %v562 = vsel %vm557, %v466, 0
    %vm564 = vcmask 1043456
    %v566 = vsel %vm564, %v537, 0
    %v569 = vsel %vm564, %v538, 0
    %v572 = vsel %vm564, %v539, 0
    %v575 = vsel %vm564, %v540, 0
    %577 = vmatprep.subr.bf16.mxu0 0
    %578 = vmatpush1.bf16.msra.mxu0 0
    %579 = vmatprep.subr.bf16.mxu0 0
    %580 = vmatpush1.bf16.msra.mxu0 0
    %581 = vmatprep.subr.bf16.mxu0 0
    %582 = vmatpush1.bf16.msra.mxu0 0
    %583 = vmatprep.subr.bf16.mxu0 %v569
    %584 = vmatpush1.bf16.msra.mxu0 %v566
    %585 = vmatprep.subr.bf16.mxu0 %v534
    %586 = vmatpush1.bf16.msra.mxu0 %v533
    %587 = vmatprep.subr.bf16.mxu0 %v530
    %588 = vmatpush1.bf16.msra.mxu0 %v529
    %589 = vmatprep.subr.bf16.mxu0 %v526
    %590 = vmatpush1.bf16.msra.mxu0 %v525
    %591 = vmatprep.subr.bf16.mxu0 %v522
    %592 = vmatpush1.bf16.msra.mxu0 %v521
    %593 = vmatprep.subr.bf16.mxu0 0
    %594 = vmatpush2.bf16.msra.mxu0 0
    %595 = vmatprep.subr.bf16.mxu0 0
    %596 = vmatpush2.bf16.msra.mxu0 0
    %597 = vmatprep.subr.bf16.mxu0 0
    %598 = vmatpush2.bf16.msra.mxu0 0
    %599 = vmatprep.subr.bf16.mxu0 0
    %600 = vmatpush2.bf16.msra.mxu0 0
    %601 = vmatprep.subr.bf16.mxu0 0
    %602 = vmatpush2.bf16.msra.mxu0 0
    %603 = vmatprep.subr.bf16.mxu0 0
    %604 = vmatpush2.bf16.msra.mxu0 0
    %605 = vmatprep.subr.bf16.mxu0 0
    %606 = vmatpush2.bf16.msra.mxu0 0
    %607 = vmatprep.subr.bf16.mxu0 0
    %608 = vmatpush2.bf16.msra.mxu0 0
    %609 = vmatprep.mubr.bf16.mxu0 0
    %610 = vmatmul.mubr.bf16.gmra.mxu0 %v559
    %v611 = vpop.f32.mrf.mxu0
    %v612 = vadd.f32 %v440, %v611
    %v613 = vpop.f32.mrf.mxu0
    %v614 = vadd.f32 %v440, %v613
    %v615 = vpop.f32.mrf.mxu0
    %v616 = vadd.f32 %v445, %v615
    %v617 = vpop.f32.mrf.mxu0
    %v618 = vadd.f32 %v445, %v617
    %619 = vmatprep.mubr.bf16.mxu0 0
    %620 = vmatmul.mubr.bf16.gmra.mxu0 %v562
    %v621 = vpop.f32.mrf.mxu0
    %v622 = vadd.f32 %v450, %v621
    %v623 = vpop.f32.mrf.mxu0
    %v624 = vadd.f32 %v450, %v623
    %v625 = vpop.f32.mrf.mxu0
    %v626 = vadd.f32 %v455, %v625
    %v627 = vpop.f32.mrf.mxu0
    %v628 = vadd.f32 %v455, %v627
    %629 = vdwg.mxu0
    %630 = vmatprep.subr.bf16.mxu0 0
    %631 = vmatpush1.bf16.msra.mxu0 0
    %632 = vmatprep.subr.bf16.mxu0 0
    %633 = vmatpush1.bf16.msra.mxu0 0
    %634 = vmatprep.subr.bf16.mxu0 0
    %635 = vmatpush1.bf16.msra.mxu0 0
    %636 = vmatprep.subr.bf16.mxu0 %v575
    %637 = vmatpush1.bf16.msra.mxu0 %v572
    %638 = vmatprep.subr.bf16.mxu0 %v536
    %639 = vmatpush1.bf16.msra.mxu0 %v535
    %640 = vmatprep.subr.bf16.mxu0 %v532
    %641 = vmatpush1.bf16.msra.mxu0 %v531
    %642 = vmatprep.subr.bf16.mxu0 %v528
    %643 = vmatpush1.bf16.msra.mxu0 %v527
    %644 = vmatprep.subr.bf16.mxu0 %v524
    %645 = vmatpush1.bf16.msra.mxu0 %v523
    %646 = vmatprep.subr.bf16.mxu0 0
    %647 = vmatpush2.bf16.msra.mxu0 0
    %648 = vmatprep.subr.bf16.mxu0 0
    %649 = vmatpush2.bf16.msra.mxu0 0
    %650 = vmatprep.subr.bf16.mxu0 0
    %651 = vmatpush2.bf16.msra.mxu0 0
    %652 = vmatprep.subr.bf16.mxu0 0
    %653 = vmatpush2.bf16.msra.mxu0 0
    %654 = vmatprep.subr.bf16.mxu0 0
    %655 = vmatpush2.bf16.msra.mxu0 0
    %656 = vmatprep.subr.bf16.mxu0 0
    %657 = vmatpush2.bf16.msra.mxu0 0
    %658 = vmatprep.subr.bf16.mxu0 0
    %659 = vmatpush2.bf16.msra.mxu0 0
    %660 = vmatprep.subr.bf16.mxu0 0
    %661 = vmatpush2.bf16.msra.mxu0 0
    %662 = vmatprep.mubr.bf16.mxu0 0
    %663 = vmatmul.mubr.bf16.gmra.mxu0 %v559
    %v664 = vpop.f32.mrf.mxu0
    %v665 = vadd.f32 %v440, %v664
    %v666 = vpop.f32.mrf.mxu0
    %v667 = vadd.f32 %v440, %v666
    %v668 = vpop.f32.mrf.mxu0
    %v669 = vadd.f32 %v445, %v668
    %v670 = vpop.f32.mrf.mxu0
    %v671 = vadd.f32 %v445, %v670
    %672 = vmatprep.mubr.bf16.mxu0 0
    %673 = vmatmul.mubr.bf16.gmra.mxu0 %v562
    %v674 = vpop.f32.mrf.mxu0
    %v675 = vadd.f32 %v450, %v674
    %v676 = vpop.f32.mrf.mxu0
    %v677 = vadd.f32 %v450, %v676
    %v678 = vpop.f32.mrf.mxu0
    %v679 = vadd.f32 %v455, %v678
    %v680 = vpop.f32.mrf.mxu0
    %v681 = vadd.f32 %v455, %v680
    %682 = vdwg.mxu0
    %v683 = vmax.f32 %v612, 0.0
    %v684 = vmax.f32 %v614, 0.0
    %v685 = vmax.f32 %v665, 0.0
    %v686 = vmax.f32 %v667, 0.0
    %v687 = vmax.f32 %v616, 0.0
    %v688 = vmax.f32 %v618, 0.0
    %v689 = vmax.f32 %v669, 0.0
    %v690 = vmax.f32 %v671, 0.0
    %v691 = vmax.f32 %v622, 0.0
    %v692 = vmax.f32 %v624, 0.0
    %v693 = vmax.f32 %v675, 0.0
    %v694 = vmax.f32 %v677, 0.0
    %v695 = vmax.f32 %v626, 0.0
    %v696 = vmax.f32 %v628, 0.0
    %v697 = vmax.f32 %v679, 0.0
    %v698 = vmax.f32 %v681, 0.0
    %v699 = vpack.c.bf16 %v687, %v683
    %v700 = vpack.c.bf16 %v688, %v684
    %v701 = vpack.c.bf16 %v689, %v685
    %v702 = vpack.c.bf16 %v690, %v686
    %v703 = vpack.c.bf16 %v695, %v691
    %v704 = vpack.c.bf16 %v696, %v692
    %v705 = vpack.c.bf16 %v697, %v693
    %v706 = vpack.c.bf16 %v698, %v694
    %v711 = vunpack.c.l.b16 %v699
    %v712 = vunpack.c.l.b16 %v700
    %v713 = vunpack.c.h.b16 %v699
    %v714 = vunpack.c.h.b16 %v700
    %v715 = vunpack.c.l.b16 %v703
    %v716 = vunpack.c.l.b16 %v704
    %v717 = vunpack.c.h.b16 %v703
    %v718 = vunpack.c.h.b16 %v704
    %v719 = vpack.c.b16 %v712, %v711
    %v720 = vpack.c.b16 %v714, %v713
    %v721 = vpack.c.b16 %v716, %v715
    %v722 = vpack.c.b16 %v718, %v717
    %727 = vst [vmem:[#allocation3 + $0x4] sm:$0xff] %v719
    %728 = vst [vmem:[#allocation3 + $0x24] sm:$0xff] %v720
    %729 = vst [vmem:[#allocation3 + $0x44] sm:$0xff] %v721
    %730 = vst [vmem:[#allocation3 + $0x64] sm:$0xff] %v722
    %v735 = vunpack.c.l.b16 %v701
    %v736 = vunpack.c.l.b16 %v702
    %v737 = vunpack.c.h.b16 %v701
    %v738 = vunpack.c.h.b16 %v702
    %v739 = vunpack.c.l.b16 %v705
    %v740 = vunpack.c.l.b16 %v706
    %v741 = vunpack.c.h.b16 %v705
    %v742 = vunpack.c.h.b16 %v706
    %v743 = vpack.c.b16 %v736, %v735
    %v744 = vpack.c.b16 %v738, %v737
    %v745 = vpack.c.b16 %v740, %v739
    %v746 = vpack.c.b16 %v742, %v741
    %751 = vst [vmem:[#allocation3 + $0x14] sm:$0xff] %v743
    %752 = vst [vmem:[#allocation3 + $0x34] sm:$0xff] %v744
    %753 = vst [vmem:[#allocation3 + $0x54] sm:$0xff] %v745
    %754 = vst [vmem:[#allocation3 + $0x74] sm:$0xff] %v746
    %v755 = vld [vmem:[#allocation3] sm:$0xff]
    %v756 = vld [vmem:[#allocation3 + $0x8] sm:$0xf]
    %v757 = vld [vmem:[#allocation3 + $0x20] sm:$0xff]
    %v758 = vld [vmem:[#allocation3 + $0x28] sm:$0xf]
    %v759 = vld [vmem:[#allocation3 + $0x40] sm:$0xff]
    %v760 = vld [vmem:[#allocation3 + $0x48] sm:$0xf]
    %v761 = vld [vmem:[#allocation3 + $0x60] sm:$0xff]
    %v762 = vld [vmem:[#allocation3 + $0x68] sm:$0xf]
    %v763 = vsel %vm115, %v755, 0
    %v764 = vsel %vm116, %v756, 0
    %v765 = vsel %vm115, %v757, 0
    %v766 = vsel %vm116, %v758, 0
    %v767 = vsel %vm115, %v759, 0
    %v768 = vsel %vm116, %v760, 0
    %v769 = vsel %vm115, %v761, 0
    %v770 = vsel %vm116, %v762, 0
    %779 = vrot.lane.b32.xlu0 %v763, 17
    %v780 = vpop.permute.xlu0 %779
    %781 = vrot.lane.b32.xlu0 %v764, 17
    %v782 = vpop.permute.xlu0 %781
    %783 = vrot.lane.b32.xlu0 %v765, 17
    %v784 = vpop.permute.xlu0 %783
    %785 = vrot.lane.b32.xlu0 %v766, 17
    %v786 = vpop.permute.xlu0 %785
    %787 = vrot.lane.b32.xlu0 %v767, 17
    %v788 = vpop.permute.xlu0 %787
    %789 = vrot.lane.b32.xlu0 %v768, 17
    %v790 = vpop.permute.xlu0 %789
    %791 = vrot.lane.b32.xlu0 %v769, 17
    %v792 = vpop.permute.xlu0 %791
    %793 = vrot.lane.b32.xlu0 %v770, 17
    %v794 = vpop.permute.xlu0 %793
    %v795 = vrot.slane %v780, 4
    %v796 = vrot.slane %v782, 4
    %v797 = vrot.slane %v784, 4
    %v798 = vrot.slane %v786, 4
    %v799 = vrot.slane %v788, 4
    %v800 = vrot.slane %v790, 4
    %v801 = vrot.slane %v792, 4
    %v802 = vrot.slane %v794, 4
    %v803 = vsel %vm127, %v795, %v796
    %v804 = vsel %vm129, %v780, %v803
    %v805 = vsel %vm127, %v797, %v798
    %v806 = vsel %vm129, %v784, %v805
    %v807 = vsel %vm127, %v799, %v800
    %v808 = vsel %vm129, %v788, %v807
    %v809 = vsel %vm127, %v801, %v802
    %v810 = vsel %vm129, %v792, %v809
    %815 = vst [vmem:[#allocation5] sm:$0xff] %v804
    %816 = vst [vmem:[#allocation5 + $0x10] sm:$0xff] %v806
    %817 = vst [vmem:[#allocation5 + $0x20] sm:$0xff] %v808
    %818 = vst [vmem:[#allocation5 + $0x30] sm:$0xff] %v810
    %v819 = vld [vmem:[#allocation3] sm:$0xff]
    %v820 = vld [vmem:[#allocation3 + $0x8] sm:$0xf]
    %v821 = vld [vmem:[#allocation3 + $0x20] sm:$0xff]
    %v822 = vld [vmem:[#allocation3 + $0x28] sm:$0xf]
    %v823 = vld [vmem:[#allocation3 + $0x40] sm:$0xff]
    %v824 = vld [vmem:[#allocation3 + $0x48] sm:$0xf]
    %v825 = vld [vmem:[#allocation3 + $0x60] sm:$0xff]
    %v826 = vld [vmem:[#allocation3 + $0x68] sm:$0xf]
    %835 = vrot.lane.b32.xlu0 %v819, 16
    %v836 = vpop.permute.xlu0 %835
    %837 = vrot.lane.b32.xlu0 %v820, 16
    %v838 = vpop.permute.xlu0 %837
    %839 = vrot.lane.b32.xlu0 %v821, 16
    %v840 = vpop.permute.xlu0 %839
    %841 = vrot.lane.b32.xlu0 %v822, 16
    %v842 = vpop.permute.xlu0 %841
    %843 = vrot.lane.b32.xlu0 %v823, 16
    %v844 = vpop.permute.xlu0 %843
    %845 = vrot.lane.b32.xlu0 %v824, 16
    %v846 = vpop.permute.xlu0 %845
    %847 = vrot.lane.b32.xlu0 %v825, 16
    %v848 = vpop.permute.xlu0 %847
    %849 = vrot.lane.b32.xlu0 %v826, 16
    %v850 = vpop.permute.xlu0 %849
    %v851 = vrot.slane %v836, 4
    %v852 = vrot.slane %v838, 4
    %v853 = vrot.slane %v840, 4
    %v854 = vrot.slane %v842, 4
    %v855 = vrot.slane %v844, 4
    %v856 = vrot.slane %v846, 4
    %v857 = vrot.slane %v848, 4
    %v858 = vrot.slane %v850, 4
    %v859 = vsel %vm127, %v851, %v852
    %v860 = vsel %vm144, %v836, %v859
    %v861 = vsel %vm127, %v853, %v854
    %v862 = vsel %vm144, %v840, %v861
    %v863 = vsel %vm127, %v855, %v856
    %v864 = vsel %vm144, %v844, %v863
    %v865 = vsel %vm127, %v857, %v858
    %v866 = vsel %vm144, %v848, %v865
    %871 = vst [vmem:[#allocation5 + $0x40] sm:$0xff] %v860
    %872 = vst [vmem:[#allocation5 + $0x50] sm:$0xff] %v862
    %873 = vst [vmem:[#allocation5 + $0x60] sm:$0xff] %v864
    %874 = vst [vmem:[#allocation5 + $0x70] sm:$0xff] %v866
    %v875 = vld [vmem:[#allocation3] sm:$0xff]
    %v876 = vld [vmem:[#allocation3 + $0x8] sm:$0xf]
    %v877 = vld [vmem:[#allocation3 + $0x20] sm:$0xff]
    %v878 = vld [vmem:[#allocation3 + $0x28] sm:$0xf]
    %v879 = vld [vmem:[#allocation3 + $0x40] sm:$0xff]
    %v880 = vld [vmem:[#allocation3 + $0x48] sm:$0xf]
    %v881 = vld [vmem:[#allocation3 + $0x60] sm:$0xff]
    %v882 = vld [vmem:[#allocation3 + $0x68] sm:$0xf]
    %v883 = vsel %vm161, %v875, 0
    %v884 = vsel %vm162, %v876, 0
    %v885 = vsel %vm161, %v877, 0
    %v886 = vsel %vm162, %v878, 0
    %v887 = vsel %vm161, %v879, 0
    %v888 = vsel %vm162, %v880, 0
    %v889 = vsel %vm161, %v881, 0
    %v890 = vsel %vm162, %v882, 0
    %899 = vrot.lane.b32.xlu0 %v883, 15
    %v900 = vpop.permute.xlu0 %899
    %901 = vrot.lane.b32.xlu0 %v884, 15
    %v902 = vpop.permute.xlu0 %901
    %903 = vrot.lane.b32.xlu0 %v885, 15
    %v904 = vpop.permute.xlu0 %903
    %905 = vrot.lane.b32.xlu0 %v886, 15
    %v906 = vpop.permute.xlu0 %905
    %907 = vrot.lane.b32.xlu0 %v887, 15
    %v908 = vpop.permute.xlu0 %907
    %909 = vrot.lane.b32.xlu0 %v888, 15
    %v910 = vpop.permute.xlu0 %909
    %911 = vrot.lane.b32.xlu0 %v889, 15
    %v912 = vpop.permute.xlu0 %911
    %913 = vrot.lane.b32.xlu0 %v890, 15
    %v914 = vpop.permute.xlu0 %913
    %v915 = vrot.slane %v900, 4
    %v916 = vrot.slane %v902, 4
    %v917 = vrot.slane %v904, 4
    %v918 = vrot.slane %v906, 4
    %v919 = vrot.slane %v908, 4
    %v920 = vrot.slane %v910, 4
    %v921 = vrot.slane %v912, 4
    %v922 = vrot.slane %v914, 4
    %v923 = vsel %vm127, %v915, %v916
    %v924 = vsel %vm174, %v900, %v923
    %v925 = vsel %vm127, %v917, %v918
    %v926 = vsel %vm174, %v904, %v925
    %v927 = vsel %vm127, %v919, %v920
    %v928 = vsel %vm174, %v908, %v927
    %v929 = vsel %vm127, %v921, %v922
    %v930 = vsel %vm174, %v912, %v929
    %935 = vst [vmem:[#allocation5 + $0x80] sm:$0xff] %v924
    %936 = vst [vmem:[#allocation5 + $0x90] sm:$0xff] %v926
    %937 = vst [vmem:[#allocation5 + $0xa0] sm:$0xff] %v928
    %938 = vst [vmem:[#allocation5 + $0xb0] sm:$0xff] %v930
    %v939 = vld [vmem:[#allocation3] sm:$0xff]
    %v940 = vld [vmem:[#allocation3 + $0x8] sm:$0xf]
    %v941 = vld [vmem:[#allocation3 + $0x20] sm:$0xff]
    %v942 = vld [vmem:[#allocation3 + $0x28] sm:$0xf]
    %v943 = vld [vmem:[#allocation3 + $0x40] sm:$0xff]
    %v944 = vld [vmem:[#allocation3 + $0x48] sm:$0xf]
    %v945 = vld [vmem:[#allocation3 + $0x60] sm:$0xff]
    %v946 = vld [vmem:[#allocation3 + $0x68] sm:$0xf]
    %v947 = vsel %vm185, %v939, 0
    %v948 = vsel %vm186, %v940, 0
    %v949 = vsel %vm185, %v941, 0
    %v950 = vsel %vm186, %v942, 0
    %v951 = vsel %vm185, %v943, 0
    %v952 = vsel %vm186, %v944, 0
    %v953 = vsel %vm185, %v945, 0
    %v954 = vsel %vm186, %v946, 0
    %963 = vrot.lane.b32.xlu0 %v947, 1
    %v964 = vpop.permute.xlu0 %963
    %965 = vrot.lane.b32.xlu0 %v948, 1
    %v966 = vpop.permute.xlu0 %965
    %967 = vrot.lane.b32.xlu0 %v949, 1
    %v968 = vpop.permute.xlu0 %967
    %969 = vrot.lane.b32.xlu0 %v950, 1
    %v970 = vpop.permute.xlu0 %969
    %971 = vrot.lane.b32.xlu0 %v951, 1
    %v972 = vpop.permute.xlu0 %971
    %973 = vrot.lane.b32.xlu0 %v952, 1
    %v974 = vpop.permute.xlu0 %973
    %975 = vrot.lane.b32.xlu0 %v953, 1
    %v976 = vpop.permute.xlu0 %975
    %977 = vrot.lane.b32.xlu0 %v954, 1
    %v978 = vpop.permute.xlu0 %977
    %v979 = vrot.slane %v964, 4
    %v980 = vrot.slane %v966, 4
    %v981 = vrot.slane %v968, 4
    %v982 = vrot.slane %v970, 4
    %v983 = vrot.slane %v972, 4
    %v984 = vrot.slane %v974, 4
    %v985 = vrot.slane %v976, 4
    %v986 = vrot.slane %v978, 4
    %v987 = vsel %vm127, %v979, %v980
    %v988 = vsel %vm198, %v964, %v987
    %v989 = vsel %vm127, %v981, %v982
    %v990 = vsel %vm198, %v968, %v989
    %v991 = vsel %vm127, %v983, %v984
    %v992 = vsel %vm198, %v972, %v991
    %v993 = vsel %vm127, %v985, %v986
    %v994 = vsel %vm198, %v976, %v993
    %999 = vst [vmem:[#allocation5 + $0xc0] sm:$0xff] %v988
    %1000 = vst [vmem:[#allocation5 + $0xd0] sm:$0xff] %v990
    %1001 = vst [vmem:[#allocation5 + $0xe0] sm:$0xff] %v992
    %1002 = vst [vmem:[#allocation5 + $0xf0] sm:$0xff] %v994
    %v1003 = vld [vmem:[#allocation3 + $0x4] sm:$0xff]
    %v1004 = vld [vmem:[#allocation3 + $0x24] sm:$0xff]
    %v1005 = vld [vmem:[#allocation3 + $0x44] sm:$0xff]
    %v1006 = vld [vmem:[#allocation3 + $0x64] sm:$0xff]
    %1007 = vst [vmem:[#allocation5 + $0x100] sm:$0xff] %v1003
    %1008 = vst [vmem:[#allocation5 + $0x110] sm:$0xff] %v1004
    %1009 = vst [vmem:[#allocation5 + $0x120] sm:$0xff] %v1005
    %1010 = vst [vmem:[#allocation5 + $0x130] sm:$0xff] %v1006
    %v1011 = vld [vmem:[#allocation3 + $0x4] sm:$0xff]
    %v1012 = vld [vmem:[#allocation3 + $0xc] sm:$0xf]
    %v1013 = vld [vmem:[#allocation3 + $0x24] sm:$0xff]
    %v1014 = vld [vmem:[#allocation3 + $0x2c] sm:$0xf]
    %v1015 = vld [vmem:[#allocation3 + $0x44] sm:$0xff]
    %v1016 = vld [vmem:[#allocation3 + $0x4c] sm:$0xf]
    %v1017 = vld [vmem:[#allocation3 + $0x64] sm:$0xff]
    %v1018 = vld [vmem:[#allocation3 + $0x6c] sm:$0xf]
    %v1019 = vsel %vm210, %v1011, 0
    %v1020 = vsel %vm211, %v1012, 0
    %v1021 = vsel %vm210, %v1013, 0
    %v1022 = vsel %vm211, %v1014, 0
    %v1023 = vsel %vm210, %v1015, 0
    %v1024 = vsel %vm211, %v1016, 0
    %v1025 = vsel %vm210, %v1017, 0
    %v1026 = vsel %vm211, %v1018, 0
    %1035 = vrot.lane.b32.xlu0 %v1019, 127
    %v1036 = vpop.permute.xlu0 %1035
    %1037 = vrot.lane.b32.xlu0 %v1020, 127
    %v1038 = vpop.permute.xlu0 %1037
    %1039 = vrot.lane.b32.xlu0 %v1021, 127
    %v1040 = vpop.permute.xlu0 %1039
    %1041 = vrot.lane.b32.xlu0 %v1022, 127
    %v1042 = vpop.permute.xlu0 %1041
    %1043 = vrot.lane.b32.xlu0 %v1023, 127
    %v1044 = vpop.permute.xlu0 %1043
    %1045 = vrot.lane.b32.xlu0 %v1024, 127
    %v1046 = vpop.permute.xlu0 %1045
    %1047 = vrot.lane.b32.xlu0 %v1025, 127
    %v1048 = vpop.permute.xlu0 %1047
    %1049 = vrot.lane.b32.xlu0 %v1026, 127
    %v1050 = vpop.permute.xlu0 %1049
    %v1051 = vrot.slane %v1036, 4
    %v1052 = vrot.slane %v1038, 4
    %v1053 = vrot.slane %v1040, 4
    %v1054 = vrot.slane %v1042, 4
    %v1055 = vrot.slane %v1044, 4
    %v1056 = vrot.slane %v1046, 4
    %v1057 = vrot.slane %v1048, 4
    %v1058 = vrot.slane %v1050, 4
    %v1059 = vsel %vm127, %v1051, %v1052
    %v1060 = vsel %vm183, %v1036, %v1059
    %v1061 = vsel %vm127, %v1053, %v1054
    %v1062 = vsel %vm183, %v1040, %v1061
    %v1063 = vsel %vm127, %v1055, %v1056
    %v1064 = vsel %vm183, %v1044, %v1063
    %v1065 = vsel %vm127, %v1057, %v1058
    %v1066 = vsel %vm183, %v1048, %v1065
    %1071 = vst [vmem:[#allocation5 + $0x140] sm:$0xff] %v1060
    %1072 = vst [vmem:[#allocation5 + $0x150] sm:$0xff] %v1062
    %1073 = vst [vmem:[#allocation5 + $0x160] sm:$0xff] %v1064
    %1074 = vst [vmem:[#allocation5 + $0x170] sm:$0xff] %v1066
    %v1075 = vld [vmem:[#allocation3 + $0x4] sm:$0xff]
    %v1076 = vld [vmem:[#allocation3 + $0xc] sm:$0xf]
    %v1077 = vld [vmem:[#allocation3 + $0x24] sm:$0xff]
    %v1078 = vld [vmem:[#allocation3 + $0x2c] sm:$0xf]
    %v1079 = vld [vmem:[#allocation3 + $0x44] sm:$0xff]
    %v1080 = vld [vmem:[#allocation3 + $0x4c] sm:$0xf]
    %v1081 = vld [vmem:[#allocation3 + $0x64] sm:$0xff]
    %v1082 = vld [vmem:[#allocation3 + $0x6c] sm:$0xf]
    %v1083 = vsel %vm232, %v1075, 0
    %v1084 = vsel %vm233, %v1076, 0
    %v1085 = vsel %vm232, %v1077, 0
    %v1086 = vsel %vm233, %v1078, 0
    %v1087 = vsel %vm232, %v1079, 0
    %v1088 = vsel %vm233, %v1080, 0
    %v1089 = vsel %vm232, %v1081, 0
    %v1090 = vsel %vm233, %v1082, 0
    %1099 = vrot.lane.b32.xlu0 %v1083, 113
    %v1100 = vpop.permute.xlu0 %1099
    %1101 = vrot.lane.b32.xlu0 %v1084, 113
    %v1102 = vpop.permute.xlu0 %1101
    %1103 = vrot.lane.b32.xlu0 %v1085, 113
    %v1104 = vpop.permute.xlu0 %1103
    %1105 = vrot.lane.b32.xlu0 %v1086, 113
    %v1106 = vpop.permute.xlu0 %1105
    %1107 = vrot.lane.b32.xlu0 %v1087, 113
    %v1108 = vpop.permute.xlu0 %1107
    %1109 = vrot.lane.b32.xlu0 %v1088, 113
    %v1110 = vpop.permute.xlu0 %1109
    %1111 = vrot.lane.b32.xlu0 %v1089, 113
    %v1112 = vpop.permute.xlu0 %1111
    %1113 = vrot.lane.b32.xlu0 %v1090, 113
    %v1114 = vpop.permute.xlu0 %1113
    %v1115 = vrot.slane %v1100, 4
    %v1116 = vrot.slane %v1102, 4
    %v1117 = vrot.slane %v1104, 4
    %v1118 = vrot.slane %v1106, 4
    %v1119 = vrot.slane %v1108, 4
    %v1120 = vrot.slane %v1110, 4
    %v1121 = vrot.slane %v1112, 4
    %v1122 = vrot.slane %v1114, 4
    %v1123 = vsel %vm127, %v1115, %v1116
    %v1124 = vsel %vm159, %v1100, %v1123
    %v1125 = vsel %vm127, %v1117, %v1118
    %v1126 = vsel %vm159, %v1104, %v1125
    %v1127 = vsel %vm127, %v1119, %v1120
    %v1128 = vsel %vm159, %v1108, %v1127
    %v1129 = vsel %vm127, %v1121, %v1122
    %v1130 = vsel %vm159, %v1112, %v1129
    %1135 = vst [vmem:[#allocation5 + $0x180] sm:$0xff] %v1124
    %1136 = vst [vmem:[#allocation5 + $0x190] sm:$0xff] %v1126
    %1137 = vst [vmem:[#allocation5 + $0x1a0] sm:$0xff] %v1128
    %1138 = vst [vmem:[#allocation5 + $0x1b0] sm:$0xff] %v1130
    %v1139 = vld [vmem:[#allocation3 + $0x4] sm:$0xff]
    %v1140 = vld [vmem:[#allocation3 + $0xc] sm:$0xf]
    %v1141 = vld [vmem:[#allocation3 + $0x24] sm:$0xff]
    %v1142 = vld [vmem:[#allocation3 + $0x2c] sm:$0xf]
    %v1143 = vld [vmem:[#allocation3 + $0x44] sm:$0xff]
    %v1144 = vld [vmem:[#allocation3 + $0x4c] sm:$0xf]
    %v1145 = vld [vmem:[#allocation3 + $0x64] sm:$0xff]
    %v1146 = vld [vmem:[#allocation3 + $0x6c] sm:$0xf]
    %1155 = vrot.lane.b32.xlu0 %v1139, 112
    %v1156 = vpop.permute.xlu0 %1155
    %1157 = vrot.lane.b32.xlu0 %v1140, 112
    %v1158 = vpop.permute.xlu0 %1157
    %1159 = vrot.lane.b32.xlu0 %v1141, 112
    %v1160 = vpop.permute.xlu0 %1159
    %1161 = vrot.lane.b32.xlu0 %v1142, 112
    %v1162 = vpop.permute.xlu0 %1161
    %1163 = vrot.lane.b32.xlu0 %v1143, 112
    %v1164 = vpop.permute.xlu0 %1163
    %1165 = vrot.lane.b32.xlu0 %v1144, 112
    %v1166 = vpop.permute.xlu0 %1165
    %1167 = vrot.lane.b32.xlu0 %v1145, 112
    %v1168 = vpop.permute.xlu0 %1167
    %1169 = vrot.lane.b32.xlu0 %v1146, 112
    %v1170 = vpop.permute.xlu0 %1169
    %v1171 = vrot.slane %v1156, 4
    %v1172 = vrot.slane %v1158, 4
    %v1173 = vrot.slane %v1160, 4
    %v1174 = vrot.slane %v1162, 4
    %v1175 = vrot.slane %v1164, 4
    %v1176 = vrot.slane %v1166, 4
    %v1177 = vrot.slane %v1168, 4
    %v1178 = vrot.slane %v1170, 4
    %v1179 = vsel %vm127, %v1171, %v1172
    %v1180 = vsel %vm259, %v1156, %v1179
    %v1181 = vsel %vm127, %v1173, %v1174
    %v1182 = vsel %vm259, %v1160, %v1181
    %v1183 = vsel %vm127, %v1175, %v1176
    %v1184 = vsel %vm259, %v1164, %v1183
    %v1185 = vsel %vm127, %v1177, %v1178
    %v1186 = vsel %vm259, %v1168, %v1185
    %1191 = vst [vmem:[#allocation5 + $0x1c0] sm:$0xff] %v1180
    %1192 = vst [vmem:[#allocation5 + $0x1d0] sm:$0xff] %v1182
    %1193 = vst [vmem:[#allocation5 + $0x1e0] sm:$0xff] %v1184
    %1194 = vst [vmem:[#allocation5 + $0x1f0] sm:$0xff] %v1186
    %v1195 = vld [vmem:[#allocation3 + $0x4] sm:$0xff]
    %v1196 = vld [vmem:[#allocation3 + $0xc] sm:$0xf]
    %v1197 = vld [vmem:[#allocation3 + $0x24] sm:$0xff]
    %v1198 = vld [vmem:[#allocation3 + $0x2c] sm:$0xf]
    %v1199 = vld [vmem:[#allocation3 + $0x44] sm:$0xff]
    %v1200 = vld [vmem:[#allocation3 + $0x4c] sm:$0xf]
    %v1201 = vld [vmem:[#allocation3 + $0x64] sm:$0xff]
    %v1202 = vld [vmem:[#allocation3 + $0x6c] sm:$0xf]
    %v1203 = vsel %vm269, %v1195, 0
    %v1204 = vsel %vm270, %v1196, 0
    %v1205 = vsel %vm269, %v1197, 0
    %v1206 = vsel %vm270, %v1198, 0
    %v1207 = vsel %vm269, %v1199, 0
    %v1208 = vsel %vm270, %v1200, 0
    %v1209 = vsel %vm269, %v1201, 0
    %v1210 = vsel %vm270, %v1202, 0
    %1219 = vrot.lane.b32.xlu0 %v1203, 111
    %v1220 = vpop.permute.xlu0 %1219
    %1221 = vrot.lane.b32.xlu0 %v1204, 111
    %v1222 = vpop.permute.xlu0 %1221
    %1223 = vrot.lane.b32.xlu0 %v1205, 111
    %v1224 = vpop.permute.xlu0 %1223
    %1225 = vrot.lane.b32.xlu0 %v1206, 111
    %v1226 = vpop.permute.xlu0 %1225
    %1227 = vrot.lane.b32.xlu0 %v1207, 111
    %v1228 = vpop.permute.xlu0 %1227
    %1229 = vrot.lane.b32.xlu0 %v1208, 111
    %v1230 = vpop.permute.xlu0 %1229
    %1231 = vrot.lane.b32.xlu0 %v1209, 111
    %v1232 = vpop.permute.xlu0 %1231
    %1233 = vrot.lane.b32.xlu0 %v1210, 111
    %v1234 = vpop.permute.xlu0 %1233
    %v1235 = vrot.slane %v1220, 4
    %v1236 = vrot.slane %v1222, 4
    %v1237 = vrot.slane %v1224, 4
    %v1238 = vrot.slane %v1226, 4
    %v1239 = vrot.slane %v1228, 4
    %v1240 = vrot.slane %v1230, 4
    %v1241 = vrot.slane %v1232, 4
    %v1242 = vrot.slane %v1234, 4
    %v1243 = vsel %vm127, %v1235, %v1236
    %v1244 = vsel %vm113, %v1220, %v1243
    %v1245 = vsel %vm127, %v1237, %v1238
    %v1246 = vsel %vm113, %v1224, %v1245
    %v1247 = vsel %vm127, %v1239, %v1240
    %v1248 = vsel %vm113, %v1228, %v1247
    %v1249 = vsel %vm127, %v1241, %v1242
    %v1250 = vsel %vm113, %v1232, %v1249
    %1255 = vst [vmem:[#allocation5 + $0x200] sm:$0xff] %v1244
    %1256 = vst [vmem:[#allocation5 + $0x210] sm:$0xff] %v1246
    %1257 = vst [vmem:[#allocation5 + $0x220] sm:$0xff] %v1248
    %1258 = vst [vmem:[#allocation5 + $0x230] sm:$0xff] %v1250
    %v1259 = vld [vmem:[#allocation3 + $0x10] sm:$0xff]
    %v1260 = vld [vmem:[#allocation3 + $0x18] sm:$0xf]
    %v1261 = vld [vmem:[#allocation3 + $0x30] sm:$0xff]
    %v1262 = vld [vmem:[#allocation3 + $0x38] sm:$0xf]
    %v1263 = vld [vmem:[#allocation3 + $0x50] sm:$0xff]
    %v1264 = vld [vmem:[#allocation3 + $0x58] sm:$0xf]
    %v1265 = vld [vmem:[#allocation3 + $0x70] sm:$0xff]
    %v1266 = vld [vmem:[#allocation3 + $0x78] sm:$0xf]
    %v1267 = vsel %vm115, %v1259, 0
    %v1268 = vsel %vm116, %v1260, 0
    %v1269 = vsel %vm115, %v1261, 0
    %v1270 = vsel %vm116, %v1262, 0
    %v1271 = vsel %vm115, %v1263, 0
    %v1272 = vsel %vm116, %v1264, 0
    %v1273 = vsel %vm115, %v1265, 0
    %v1274 = vsel %vm116, %v1266, 0
    %1283 = vrot.lane.b32.xlu0 %v1267, 17
    %v1284 = vpop.permute.xlu0 %1283
    %1285 = vrot.lane.b32.xlu0 %v1268, 17
    %v1286 = vpop.permute.xlu0 %1285
    %1287 = vrot.lane.b32.xlu0 %v1269, 17
    %v1288 = vpop.permute.xlu0 %1287
    %1289 = vrot.lane.b32.xlu0 %v1270, 17
    %v1290 = vpop.permute.xlu0 %1289
    %1291 = vrot.lane.b32.xlu0 %v1271, 17
    %v1292 = vpop.permute.xlu0 %1291
    %1293 = vrot.lane.b32.xlu0 %v1272, 17
    %v1294 = vpop.permute.xlu0 %1293
    %1295 = vrot.lane.b32.xlu0 %v1273, 17
    %v1296 = vpop.permute.xlu0 %1295
    %1297 = vrot.lane.b32.xlu0 %v1274, 17
    %v1298 = vpop.permute.xlu0 %1297
    %v1299 = vrot.slane %v1284, 4
    %v1300 = vrot.slane %v1286, 4
    %v1301 = vrot.slane %v1288, 4
    %v1302 = vrot.slane %v1290, 4
    %v1303 = vrot.slane %v1292, 4
    %v1304 = vrot.slane %v1294, 4
    %v1305 = vrot.slane %v1296, 4
    %v1306 = vrot.slane %v1298, 4
    %v1307 = vsel %vm127, %v1299, %v1300
    %v1308 = vsel %vm129, %v1284, %v1307
    %v1309 = vsel %vm127, %v1301, %v1302
    %v1310 = vsel %vm129, %v1288, %v1309
    %v1311 = vsel %vm127, %v1303, %v1304
    %v1312 = vsel %vm129, %v1292, %v1311
    %v1313 = vsel %vm127, %v1305, %v1306
    %v1314 = vsel %vm129, %v1296, %v1313
    %1319 = vst [vmem:[#allocation5 + $0x8] sm:$0xff] %v1308
    %1320 = vst [vmem:[#allocation5 + $0x18] sm:$0xff] %v1310
    %1321 = vst [vmem:[#allocation5 + $0x28] sm:$0xff] %v1312
    %1322 = vst [vmem:[#allocation5 + $0x38] sm:$0xff] %v1314
    %v1323 = vld [vmem:[#allocation3 + $0x10] sm:$0xff]
    %v1324 = vld [vmem:[#allocation3 + $0x18] sm:$0xf]
    %v1325 = vld [vmem:[#allocation3 + $0x30] sm:$0xff]
    %v1326 = vld [vmem:[#allocation3 + $0x38] sm:$0xf]
    %v1327 = vld [vmem:[#allocation3 + $0x50] sm:$0xff]
    %v1328 = vld [vmem:[#allocation3 + $0x58] sm:$0xf]
    %v1329 = vld [vmem:[#allocation3 + $0x70] sm:$0xff]
    %v1330 = vld [vmem:[#allocation3 + $0x78] sm:$0xf]
    %1339 = vrot.lane.b32.xlu0 %v1323, 16
    %v1340 = vpop.permute.xlu0 %1339
    %1341 = vrot.lane.b32.xlu0 %v1324, 16
    %v1342 = vpop.permute.xlu0 %1341
    %1343 = vrot.lane.b32.xlu0 %v1325, 16
    %v1344 = vpop.permute.xlu0 %1343
    %1345 = vrot.lane.b32.xlu0 %v1326, 16
    %v1346 = vpop.permute.xlu0 %1345
    %1347 = vrot.lane.b32.xlu0 %v1327, 16
    %v1348 = vpop.permute.xlu0 %1347
    %1349 = vrot.lane.b32.xlu0 %v1328, 16
    %v1350 = vpop.permute.xlu0 %1349
    %1351 = vrot.lane.b32.xlu0 %v1329, 16
    %v1352 = vpop.permute.xlu0 %1351
    %1353 = vrot.lane.b32.xlu0 %v1330, 16
    %v1354 = vpop.permute.xlu0 %1353
    %v1355 = vrot.slane %v1340, 4
    %v1356 = vrot.slane %v1342, 4
    %v1357 = vrot.slane %v1344, 4
    %v1358 = vrot.slane %v1346, 4
    %v1359 = vrot.slane %v1348, 4
    %v1360 = vrot.slane %v1350, 4
    %v1361 = vrot.slane %v1352, 4
    %v1362 = vrot.slane %v1354, 4
    %v1363 = vsel %vm127, %v1355, %v1356
    %v1364 = vsel %vm144, %v1340, %v1363
    %v1365 = vsel %vm127, %v1357, %v1358
    %v1366 = vsel %vm144, %v1344, %v1365
    %v1367 = vsel %vm127, %v1359, %v1360
    %v1368 = vsel %vm144, %v1348, %v1367
    %v1369 = vsel %vm127, %v1361, %v1362
    %v1370 = vsel %vm144, %v1352, %v1369
    %1375 = vst [vmem:[#allocation5 + $0x48] sm:$0xff] %v1364
    %1376 = vst [vmem:[#allocation5 + $0x58] sm:$0xff] %v1366
    %1377 = vst [vmem:[#allocation5 + $0x68] sm:$0xff] %v1368
    %1378 = vst [vmem:[#allocation5 + $0x78] sm:$0xff] %v1370
    %v1379 = vld [vmem:[#allocation3 + $0x10] sm:$0xff]
    %v1380 = vld [vmem:[#allocation3 + $0x18] sm:$0xf]
    %v1381 = vld [vmem:[#allocation3 + $0x30] sm:$0xff]
    %v1382 = vld [vmem:[#allocation3 + $0x38] sm:$0xf]
    %v1383 = vld [vmem:[#allocation3 + $0x50] sm:$0xff]
    %v1384 = vld [vmem:[#allocation3 + $0x58] sm:$0xf]
    %v1385 = vld [vmem:[#allocation3 + $0x70] sm:$0xff]
    %v1386 = vld [vmem:[#allocation3 + $0x78] sm:$0xf]
    %v1387 = vsel %vm161, %v1379, 0
    %v1388 = vsel %vm162, %v1380, 0
    %v1389 = vsel %vm161, %v1381, 0
    %v1390 = vsel %vm162, %v1382, 0
    %v1391 = vsel %vm161, %v1383, 0
    %v1392 = vsel %vm162, %v1384, 0
    %v1393 = vsel %vm161, %v1385, 0
    %v1394 = vsel %vm162, %v1386, 0
    %1403 = vrot.lane.b32.xlu0 %v1387, 15
    %v1404 = vpop.permute.xlu0 %1403
    %1405 = vrot.lane.b32.xlu0 %v1388, 15
    %v1406 = vpop.permute.xlu0 %1405
    %1407 = vrot.lane.b32.xlu0 %v1389, 15
    %v1408 = vpop.permute.xlu0 %1407
    %1409 = vrot.lane.b32.xlu0 %v1390, 15
    %v1410 = vpop.permute.xlu0 %1409
    %1411 = vrot.lane.b32.xlu0 %v1391, 15
    %v1412 = vpop.permute.xlu0 %1411
    %1413 = vrot.lane.b32.xlu0 %v1392, 15
    %v1414 = vpop.permute.xlu0 %1413
    %1415 = vrot.lane.b32.xlu0 %v1393, 15
    %v1416 = vpop.permute.xlu0 %1415
    %1417 = vrot.lane.b32.xlu0 %v1394, 15
    %v1418 = vpop.permute.xlu0 %1417
    %v1419 = vrot.slane %v1404, 4
    %v1420 = vrot.slane %v1406, 4
    %v1421 = vrot.slane %v1408, 4
    %v1422 = vrot.slane %v1410, 4
    %v1423 = vrot.slane %v1412, 4
    %v1424 = vrot.slane %v1414, 4
    %v1425 = vrot.slane %v1416, 4
    %v1426 = vrot.slane %v1418, 4
    %v1427 = vsel %vm127, %v1419, %v1420
    %v1428 = vsel %vm174, %v1404, %v1427
    %v1429 = vsel %vm127, %v1421, %v1422
    %v1430 = vsel %vm174, %v1408, %v1429
    %v1431 = vsel %vm127, %v1423, %v1424
    %v1432 = vsel %vm174, %v1412, %v1431
    %v1433 = vsel %vm127, %v1425, %v1426
    %v1434 = vsel %vm174, %v1416, %v1433
    %1439 = vst [vmem:[#allocation5 + $0x88] sm:$0xff] %v1428
    %1440 = vst [vmem:[#allocation5 + $0x98] sm:$0xff] %v1430
    %1441 = vst [vmem:[#allocation5 + $0xa8] sm:$0xff] %v1432
    %1442 = vst [vmem:[#allocation5 + $0xb8] sm:$0xff] %v1434
    %v1443 = vld [vmem:[#allocation3 + $0x10] sm:$0xff]
    %v1444 = vld [vmem:[#allocation3 + $0x18] sm:$0xf]
    %v1445 = vld [vmem:[#allocation3 + $0x30] sm:$0xff]
    %v1446 = vld [vmem:[#allocation3 + $0x38] sm:$0xf]
    %v1447 = vld [vmem:[#allocation3 + $0x50] sm:$0xff]
    %v1448 = vld [vmem:[#allocation3 + $0x58] sm:$0xf]
    %v1449 = vld [vmem:[#allocation3 + $0x70] sm:$0xff]
    %v1450 = vld [vmem:[#allocation3 + $0x78] sm:$0xf]
    %v1451 = vsel %vm185, %v1443, 0
    %v1452 = vsel %vm186, %v1444, 0
    %v1453 = vsel %vm185, %v1445, 0
    %v1454 = vsel %vm186, %v1446, 0
    %v1455 = vsel %vm185, %v1447, 0
    %v1456 = vsel %vm186, %v1448, 0
    %v1457 = vsel %vm185, %v1449, 0
    %v1458 = vsel %vm186, %v1450, 0
    %1467 = vrot.lane.b32.xlu0 %v1451, 1
    %v1468 = vpop.permute.xlu0 %1467
    %1469 = vrot.lane.b32.xlu0 %v1452, 1
    %v1470 = vpop.permute.xlu0 %1469
    %1471 = vrot.lane.b32.xlu0 %v1453, 1
    %v1472 = vpop.permute.xlu0 %1471
    %1473 = vrot.lane.b32.xlu0 %v1454, 1
    %v1474 = vpop.permute.xlu0 %1473
    %1475 = vrot.lane.b32.xlu0 %v1455, 1
    %v1476 = vpop.permute.xlu0 %1475
    %1477 = vrot.lane.b32.xlu0 %v1456, 1
    %v1478 = vpop.permute.xlu0 %1477
    %1479 = vrot.lane.b32.xlu0 %v1457, 1
    %v1480 = vpop.permute.xlu0 %1479
    %1481 = vrot.lane.b32.xlu0 %v1458, 1
    %v1482 = vpop.permute.xlu0 %1481
    %v1483 = vrot.slane %v1468, 4
    %v1484 = vrot.slane %v1470, 4
    %v1485 = vrot.slane %v1472, 4
    %v1486 = vrot.slane %v1474, 4
    %v1487 = vrot.slane %v1476, 4
    %v1488 = vrot.slane %v1478, 4
    %v1489 = vrot.slane %v1480, 4
    %v1490 = vrot.slane %v1482, 4
    %v1491 = vsel %vm127, %v1483, %v1484
    %v1492 = vsel %vm198, %v1468, %v1491
    %v1493 = vsel %vm127, %v1485, %v1486
    %v1494 = vsel %vm198, %v1472, %v1493
    %v1495 = vsel %vm127, %v1487, %v1488
    %v1496 = vsel %vm198, %v1476, %v1495
    %v1497 = vsel %vm127, %v1489, %v1490
    %v1498 = vsel %vm198, %v1480, %v1497
    %1503 = vst [vmem:[#allocation5 + $0xc8] sm:$0xff] %v1492
    %1504 = vst [vmem:[#allocation5 + $0xd8] sm:$0xff] %v1494
    %1505 = vst [vmem:[#allocation5 + $0xe8] sm:$0xff] %v1496
    %1506 = vst [vmem:[#allocation5 + $0xf8] sm:$0xff] %v1498
    %v1507 = vld [vmem:[#allocation3 + $0x14] sm:$0xff]
    %v1508 = vld [vmem:[#allocation3 + $0x34] sm:$0xff]
    %v1509 = vld [vmem:[#allocation3 + $0x54] sm:$0xff]
    %v1510 = vld [vmem:[#allocation3 + $0x74] sm:$0xff]
    %1511 = vst [vmem:[#allocation5 + $0x108] sm:$0xff] %v1507
    %1512 = vst [vmem:[#allocation5 + $0x118] sm:$0xff] %v1508
    %1513 = vst [vmem:[#allocation5 + $0x128] sm:$0xff] %v1509
    %1514 = vst [vmem:[#allocation5 + $0x138] sm:$0xff] %v1510
    %v1515 = vld [vmem:[#allocation3 + $0x14] sm:$0xff]
    %v1516 = vld [vmem:[#allocation3 + $0x1c] sm:$0xf]
    %v1517 = vld [vmem:[#allocation3 + $0x34] sm:$0xff]
    %v1518 = vld [vmem:[#allocation3 + $0x3c] sm:$0xf]
    %v1519 = vld [vmem:[#allocation3 + $0x54] sm:$0xff]
    %v1520 = vld [vmem:[#allocation3 + $0x5c] sm:$0xf]
    %v1521 = vld [vmem:[#allocation3 + $0x74] sm:$0xff]
    %v1522 = vld [vmem:[#allocation3 + $0x7c] sm:$0xf]
    %v1523 = vsel %vm210, %v1515, 0
    %v1524 = vsel %vm211, %v1516, 0
    %v1525 = vsel %vm210, %v1517, 0
    %v1526 = vsel %vm211, %v1518, 0
    %v1527 = vsel %vm210, %v1519, 0
    %v1528 = vsel %vm211, %v1520, 0
    %v1529 = vsel %vm210, %v1521, 0
    %v1530 = vsel %vm211, %v1522, 0
    %1539 = vrot.lane.b32.xlu0 %v1523, 127
    %v1540 = vpop.permute.xlu0 %1539
    %1541 = vrot.lane.b32.xlu0 %v1524, 127
    %v1542 = vpop.permute.xlu0 %1541
    %1543 = vrot.lane.b32.xlu0 %v1525, 127
    %v1544 = vpop.permute.xlu0 %1543
    %1545 = vrot.lane.b32.xlu0 %v1526, 127
    %v1546 = vpop.permute.xlu0 %1545
    %1547 = vrot.lane.b32.xlu0 %v1527, 127
    %v1548 = vpop.permute.xlu0 %1547
    %1549 = vrot.lane.b32.xlu0 %v1528, 127
    %v1550 = vpop.permute.xlu0 %1549
    %1551 = vrot.lane.b32.xlu0 %v1529, 127
    %v1552 = vpop.permute.xlu0 %1551
    %1553 = vrot.lane.b32.xlu0 %v1530, 127
    %v1554 = vpop.permute.xlu0 %1553
    %v1555 = vrot.slane %v1540, 4
    %v1556 = vrot.slane %v1542, 4
    %v1557 = vrot.slane %v1544, 4
    %v1558 = vrot.slane %v1546, 4
    %v1559 = vrot.slane %v1548, 4
    %v1560 = vrot.slane %v1550, 4
    %v1561 = vrot.slane %v1552, 4
    %v1562 = vrot.slane %v1554, 4
    %v1563 = vsel %vm127, %v1555, %v1556
    %v1564 = vsel %vm183, %v1540, %v1563
    %v1565 = vsel %vm127, %v1557, %v1558
    %v1566 = vsel %vm183, %v1544, %v1565
    %v1567 = vsel %vm127, %v1559, %v1560
    %v1568 = vsel %vm183, %v1548, %v1567
    %v1569 = vsel %vm127, %v1561, %v1562
    %v1570 = vsel %vm183, %v1552, %v1569
    %1575 = vst [vmem:[#allocation5 + $0x148] sm:$0xff] %v1564
    %1576 = vst [vmem:[#allocation5 + $0x158] sm:$0xff] %v1566
    %1577 = vst [vmem:[#allocation5 + $0x168] sm:$0xff] %v1568
    %1578 = vst [vmem:[#allocation5 + $0x178] sm:$0xff] %v1570
    %v1579 = vld [vmem:[#allocation3 + $0x14] sm:$0xff]
    %v1580 = vld [vmem:[#allocation3 + $0x1c] sm:$0xf]
    %v1581 = vld [vmem:[#allocation3 + $0x34] sm:$0xff]
    %v1582 = vld [vmem:[#allocation3 + $0x3c] sm:$0xf]
    %v1583 = vld [vmem:[#allocation3 + $0x54] sm:$0xff]
    %v1584 = vld [vmem:[#allocation3 + $0x5c] sm:$0xf]
    %v1585 = vld [vmem:[#allocation3 + $0x74] sm:$0xff]
    %v1586 = vld [vmem:[#allocation3 + $0x7c] sm:$0xf]
    %v1587 = vsel %vm232, %v1579, 0
    %v1588 = vsel %vm233, %v1580, 0
    %v1589 = vsel %vm232, %v1581, 0
    %v1590 = vsel %vm233, %v1582, 0
    %v1591 = vsel %vm232, %v1583, 0
    %v1592 = vsel %vm233, %v1584, 0
    %v1593 = vsel %vm232, %v1585, 0
    %v1594 = vsel %vm233, %v1586, 0
    %1603 = vrot.lane.b32.xlu0 %v1587, 113
    %v1604 = vpop.permute.xlu0 %1603
    %1605 = vrot.lane.b32.xlu0 %v1588, 113
    %v1606 = vpop.permute.xlu0 %1605
    %1607 = vrot.lane.b32.xlu0 %v1589, 113
    %v1608 = vpop.permute.xlu0 %1607
    %1609 = vrot.lane.b32.xlu0 %v1590, 113
    %v1610 = vpop.permute.xlu0 %1609
    %1611 = vrot.lane.b32.xlu0 %v1591, 113
    %v1612 = vpop.permute.xlu0 %1611
    %1613 = vrot.lane.b32.xlu0 %v1592, 113
    %v1614 = vpop.permute.xlu0 %1613
    %1615 = vrot.lane.b32.xlu0 %v1593, 113
    %v1616 = vpop.permute.xlu0 %1615
    %1617 = vrot.lane.b32.xlu0 %v1594, 113
    %v1618 = vpop.permute.xlu0 %1617
    %v1619 = vrot.slane %v1604, 4
    %v1620 = vrot.slane %v1606, 4
    %v1621 = vrot.slane %v1608, 4
    %v1622 = vrot.slane %v1610, 4
    %v1623 = vrot.slane %v1612, 4
    %v1624 = vrot.slane %v1614, 4
    %v1625 = vrot.slane %v1616, 4
    %v1626 = vrot.slane %v1618, 4
    %v1627 = vsel %vm127, %v1619, %v1620
    %v1628 = vsel %vm159, %v1604, %v1627
    %v1629 = vsel %vm127, %v1621, %v1622
    %v1630 = vsel %vm159, %v1608, %v1629
    %v1631 = vsel %vm127, %v1623, %v1624
    %v1632 = vsel %vm159, %v1612, %v1631
    %v1633 = vsel %vm127, %v1625, %v1626
    %v1634 = vsel %vm159, %v1616, %v1633
    %1639 = vst [vmem:[#allocation5 + $0x188] sm:$0xff] %v1628
    %1640 = vst [vmem:[#allocation5 + $0x198] sm:$0xff] %v1630
    %1641 = vst [vmem:[#allocation5 + $0x1a8] sm:$0xff] %v1632
    %1642 = vst [vmem:[#allocation5 + $0x1b8] sm:$0xff] %v1634
    %v1643 = vld [vmem:[#allocation3 + $0x14] sm:$0xff]
    %v1644 = vld [vmem:[#allocation3 + $0x1c] sm:$0xf]
    %v1645 = vld [vmem:[#allocation3 + $0x34] sm:$0xff]
    %v1646 = vld [vmem:[#allocation3 + $0x3c] sm:$0xf]
    %v1647 = vld [vmem:[#allocation3 + $0x54] sm:$0xff]
    %v1648 = vld [vmem:[#allocation3 + $0x5c] sm:$0xf]
    %v1649 = vld [vmem:[#allocation3 + $0x74] sm:$0xff]
    %v1650 = vld [vmem:[#allocation3 + $0x7c] sm:$0xf]
    %1659 = vrot.lane.b32.xlu0 %v1643, 112
    %v1660 = vpop.permute.xlu0 %1659
    %1661 = vrot.lane.b32.xlu0 %v1644, 112
    %v1662 = vpop.permute.xlu0 %1661
    %1663 = vrot.lane.b32.xlu0 %v1645, 112
    %v1664 = vpop.permute.xlu0 %1663
    %1665 = vrot.lane.b32.xlu0 %v1646, 112
    %v1666 = vpop.permute.xlu0 %1665
    %1667 = vrot.lane.b32.xlu0 %v1647, 112
    %v1668 = vpop.permute.xlu0 %1667
    %1669 = vrot.lane.b32.xlu0 %v1648, 112
    %v1670 = vpop.permute.xlu0 %1669
    %1671 = vrot.lane.b32.xlu0 %v1649, 112
    %v1672 = vpop.permute.xlu0 %1671
    %1673 = vrot.lane.b32.xlu0 %v1650, 112
    %v1674 = vpop.permute.xlu0 %1673
    %v1675 = vrot.slane %v1660, 4
    %v1676 = vrot.slane %v1662, 4
    %v1677 = vrot.slane %v1664, 4
    %v1678 = vrot.slane %v1666, 4
    %v1679 = vrot.slane %v1668, 4
    %v1680 = vrot.slane %v1670, 4
    %v1681 = vrot.slane %v1672, 4
    %v1682 = vrot.slane %v1674, 4
    %v1683 = vsel %vm127, %v1675, %v1676
    %v1684 = vsel %vm259, %v1660, %v1683
    %v1685 = vsel %vm127, %v1677, %v1678
    %v1686 = vsel %vm259, %v1664, %v1685
    %v1687 = vsel %vm127, %v1679, %v1680
    %v1688 = vsel %vm259, %v1668, %v1687
    %v1689 = vsel %vm127, %v1681, %v1682
    %v1690 = vsel %vm259, %v1672, %v1689
    %1695 = vst [vmem:[#allocation5 + $0x1c8] sm:$0xff] %v1684
    %1696 = vst [vmem:[#allocation5 + $0x1d8] sm:$0xff] %v1686
    %1697 = vst [vmem:[#allocation5 + $0x1e8] sm:$0xff] %v1688
    %1698 = vst [vmem:[#allocation5 + $0x1f8] sm:$0xff] %v1690
    %v1699 = vld [vmem:[#allocation3 + $0x14] sm:$0xff]
    %v1700 = vld [vmem:[#allocation3 + $0x1c] sm:$0xf]
    %v1701 = vld [vmem:[#allocation3 + $0x34] sm:$0xff]
    %v1702 = vld [vmem:[#allocation3 + $0x3c] sm:$0xf]
    %v1703 = vld [vmem:[#allocation3 + $0x54] sm:$0xff]
    %v1704 = vld [vmem:[#allocation3 + $0x5c] sm:$0xf]
    %v1705 = vld [vmem:[#allocation3 + $0x74] sm:$0xff]
    %v1706 = vld [vmem:[#allocation3 + $0x7c] sm:$0xf]
    %v1707 = vsel %vm269, %v1699, 0
    %v1708 = vsel %vm270, %v1700, 0
    %v1709 = vsel %vm269, %v1701, 0
    %v1710 = vsel %vm270, %v1702, 0
    %v1711 = vsel %vm269, %v1703, 0
    %v1712 = vsel %vm270, %v1704, 0
    %v1713 = vsel %vm269, %v1705, 0
    %v1714 = vsel %vm270, %v1706, 0
    %1723 = vrot.lane.b32.xlu0 %v1707, 111
    %v1724 = vpop.permute.xlu0 %1723
    %1725 = vrot.lane.b32.xlu0 %v1708, 111
    %v1726 = vpop.permute.xlu0 %1725
    %1727 = vrot.lane.b32.xlu0 %v1709, 111
    %v1728 = vpop.permute.xlu0 %1727
    %1729 = vrot.lane.b32.xlu0 %v1710, 111
    %v1730 = vpop.permute.xlu0 %1729
    %1731 = vrot.lane.b32.xlu0 %v1711, 111
    %v1732 = vpop.permute.xlu0 %1731
    %1733 = vrot.lane.b32.xlu0 %v1712, 111
    %v1734 = vpop.permute.xlu0 %1733
    %1735 = vrot.lane.b32.xlu0 %v1713, 111
    %v1736 = vpop.permute.xlu0 %1735
    %1737 = vrot.lane.b32.xlu0 %v1714, 111
    %v1738 = vpop.permute.xlu0 %1737
    %v1739 = vrot.slane %v1724, 4
    %v1740 = vrot.slane %v1726, 4
    %v1741 = vrot.slane %v1728, 4
    %v1742 = vrot.slane %v1730, 4
    %v1743 = vrot.slane %v1732, 4
    %v1744 = vrot.slane %v1734, 4
    %v1745 = vrot.slane %v1736, 4
    %v1746 = vrot.slane %v1738, 4
    %v1747 = vsel %vm127, %v1739, %v1740
    %v1748 = vsel %vm113, %v1724, %v1747
    %v1749 = vsel %vm127, %v1741, %v1742
    %v1750 = vsel %vm113, %v1728, %v1749
    %v1751 = vsel %vm127, %v1743, %v1744
    %v1752 = vsel %vm113, %v1732, %v1751
    %v1753 = vsel %vm127, %v1745, %v1746
    %v1754 = vsel %vm113, %v1736, %v1753
    %1759 = vst [vmem:[#allocation5 + $0x208] sm:$0xff] %v1748
    %1760 = vst [vmem:[#allocation5 + $0x218] sm:$0xff] %v1750
    %1761 = vst [vmem:[#allocation5 + $0x228] sm:$0xff] %v1752
    %1762 = vst [vmem:[#allocation5 + $0x238] sm:$0xff] %v1754
    %v1763 = vld [vmem:[%s3] sm:$0x7]
    %v1764 = vld [vmem:[#allocation5] sm:$0xff]
    %v1765 = vld [vmem:[#allocation5 + $0x8] sm:$0xff]
    %v1766 = vld [vmem:[#allocation5 + $0x10] sm:$0xff]
    %v1767 = vld [vmem:[#allocation5 + $0x18] sm:$0xff]
    %v1768 = vld [vmem:[#allocation5 + $0x20] sm:$0xff]
    %v1769 = vld [vmem:[#allocation5 + $0x28] sm:$0xff]
    %v1770 = vld [vmem:[#allocation5 + $0x30] sm:$0xff]
    %v1771 = vld [vmem:[#allocation5 + $0x38] sm:$0xff]
    %v1772 = vld [vmem:[#allocation5 + $0x40] sm:$0xff]
    %v1773 = vld [vmem:[#allocation5 + $0x48] sm:$0xff]
    %v1774 = vld [vmem:[#allocation5 + $0x50] sm:$0xff]
    %v1775 = vld [vmem:[#allocation5 + $0x58] sm:$0xff]
    %v1776 = vld [vmem:[#allocation5 + $0x60] sm:$0xff]
    %v1777 = vld [vmem:[#allocation5 + $0x68] sm:$0xff]
    %v1778 = vld [vmem:[#allocation5 + $0x70] sm:$0xff]
    %v1779 = vld [vmem:[#allocation5 + $0x78] sm:$0xff]
    %v1780 = vld [vmem:[#allocation5 + $0x80] sm:$0xff]
    %v1781 = vld [vmem:[#allocation5 + $0x88] sm:$0xff]
    %v1782 = vld [vmem:[#allocation5 + $0x90] sm:$0xff]
    %v1783 = vld [vmem:[#allocation5 + $0x98] sm:$0xff]
    %v1784 = vld [vmem:[#allocation5 + $0xa0] sm:$0xff]
    %v1785 = vld [vmem:[#allocation5 + $0xa8] sm:$0xff]
    %v1786 = vld [vmem:[#allocation5 + $0xb0] sm:$0xff]
    %v1787 = vld [vmem:[#allocation5 + $0xb8] sm:$0xff]
    %v1788 = vld [vmem:[#allocation5 + $0xc0] sm:$0xff]
    %v1789 = vld [vmem:[#allocation5 + $0xc8] sm:$0xff]
    %v1790 = vld [vmem:[#allocation5 + $0xd0] sm:$0xff]
    %v1791 = vld [vmem:[#allocation5 + $0xd8] sm:$0xff]
    %v1792 = vld [vmem:[#allocation5 + $0xe0] sm:$0xff]
    %v1793 = vld [vmem:[#allocation5 + $0xe8] sm:$0xff]
    %v1794 = vld [vmem:[#allocation5 + $0xf0] sm:$0xff]
    %v1795 = vld [vmem:[#allocation5 + $0xf8] sm:$0xff]
    %v1796 = vld [vmem:[#allocation5 + $0x100] sm:$0xff]
    %v1797 = vld [vmem:[#allocation5 + $0x108] sm:$0xff]
    %v1798 = vld [vmem:[#allocation5 + $0x110] sm:$0xff]
    %v1799 = vld [vmem:[#allocation5 + $0x118] sm:$0xff]
    %v1800 = vld [vmem:[#allocation5 + $0x120] sm:$0xff]
    %v1801 = vld [vmem:[#allocation5 + $0x128] sm:$0xff]
    %v1802 = vld [vmem:[#allocation5 + $0x130] sm:$0xff]
    %v1803 = vld [vmem:[#allocation5 + $0x138] sm:$0xff]
    %v1804 = vld [vmem:[#allocation5 + $0x140] sm:$0xff]
    %v1805 = vld [vmem:[#allocation5 + $0x148] sm:$0xff]
    %v1806 = vld [vmem:[#allocation5 + $0x150] sm:$0xff]
    %v1807 = vld [vmem:[#allocation5 + $0x158] sm:$0xff]
    %v1808 = vld [vmem:[#allocation5 + $0x160] sm:$0xff]
    %v1809 = vld [vmem:[#allocation5 + $0x168] sm:$0xff]
    %v1810 = vld [vmem:[#allocation5 + $0x170] sm:$0xff]
    %v1811 = vld [vmem:[#allocation5 + $0x178] sm:$0xff]
    %v1812 = vld [vmem:[#allocation5 + $0x180] sm:$0xff]
    %v1813 = vld [vmem:[#allocation5 + $0x188] sm:$0xff]
    %v1814 = vld [vmem:[#allocation5 + $0x190] sm:$0xff]
    %v1815 = vld [vmem:[#allocation5 + $0x198] sm:$0xff]
    %v1816 = vld [vmem:[#allocation5 + $0x1a0] sm:$0xff]
    %v1817 = vld [vmem:[#allocation5 + $0x1a8] sm:$0xff]
    %v1818 = vld [vmem:[#allocation5 + $0x1b0] sm:$0xff]
    %v1819 = vld [vmem:[#allocation5 + $0x1b8] sm:$0xff]
    %v1820 = vld [vmem:[#allocation5 + $0x1c0] sm:$0xff]
    %v1821 = vld [vmem:[#allocation5 + $0x1c8] sm:$0xff]
    %v1822 = vld [vmem:[#allocation5 + $0x1d0] sm:$0xff]
    %v1823 = vld [vmem:[#allocation5 + $0x1d8] sm:$0xff]
    %v1824 = vld [vmem:[#allocation5 + $0x1e0] sm:$0xff]
    %v1825 = vld [vmem:[#allocation5 + $0x1e8] sm:$0xff]
    %v1826 = vld [vmem:[#allocation5 + $0x1f0] sm:$0xff]
    %v1827 = vld [vmem:[#allocation5 + $0x1f8] sm:$0xff]
    %v1828 = vld [vmem:[#allocation5 + $0x200] sm:$0xff]
    %v1829 = vld [vmem:[#allocation5 + $0x208] sm:$0xff]
    %v1830 = vld [vmem:[#allocation5 + $0x210] sm:$0xff]
    %v1831 = vld [vmem:[#allocation5 + $0x218] sm:$0xff]
    %v1832 = vld [vmem:[#allocation5 + $0x220] sm:$0xff]
    %v1833 = vld [vmem:[#allocation5 + $0x228] sm:$0xff]
    %v1834 = vld [vmem:[#allocation5 + $0x230] sm:$0xff]
    %v1835 = vld [vmem:[#allocation5 + $0x238] sm:$0xff]
    %v1836 = vld [vmem:[%s4] sm:$0x3]
    %1838 = vset.pattern.permute.xlu0 0
    %1839 = vperm.xlu0 %1838, %v1836
    %v1840 = vpop.permute.xlu0 %1839
    %v1844 = vunpack.c.l.s4 1966171168
    %v1845 = vunpack.c.0.s8 %v1844
    %v1846 = vlaneseq
    %v1847 = vshrl.u32 %v1846, 7
    %v1848 = vsub.s32 %v1845, %v1847
    %v1849 = vrot.slane %v1763, %v1848
    %v1850 = vcombine.high %v1849, %v1849
    %v1852 = vunpack.c.l.s4 1966171168
    %v1853 = vunpack.c.0.s8 %v1852
    %v1854 = vlaneseq
    %v1855 = vshrl.u32 %v1854, 7
    %v1856 = vsub.s32 %v1853, %v1855
    %v1857 = vrot.slane %v1849, %v1856
    %v1859 = vunpack.c.l.s4 1966171168
    %v1860 = vunpack.c.0.s8 %v1859
    %v1861 = vlaneseq
    %v1862 = vshrl.u32 %v1861, 7
    %v1863 = vsub.s32 %v1860, %v1862
    %v1864 = vrot.slane %v1850, %v1863
    %v1865 = vcombine.high %v1857, %v1857
    %v1940 = vunpack.c.l.b16 %v1764
    %v1941 = vunpack.c.h.b16 %v1764
    %v1942 = vunpack.c.l.b16 %v1765
    %v1943 = vunpack.c.h.b16 %v1765
    %v1944 = vunpack.c.l.b16 %v1766
    %v1945 = vunpack.c.h.b16 %v1766
    %v1946 = vunpack.c.l.b16 %v1767
    %v1947 = vunpack.c.h.b16 %v1767
    %v1948 = vunpack.c.l.b16 %v1768
    %v1949 = vunpack.c.h.b16 %v1768
    %v1950 = vunpack.c.l.b16 %v1769
    %v1951 = vunpack.c.h.b16 %v1769
    %v1952 = vunpack.c.l.b16 %v1770
    %v1953 = vunpack.c.h.b16 %v1770
    %v1954 = vunpack.c.l.b16 %v1771
    %v1955 = vunpack.c.h.b16 %v1771
    %v1956 = vunpack.c.l.b16 %v1772
    %v1957 = vunpack.c.h.b16 %v1772
    %v1958 = vunpack.c.l.b16 %v1773
    %v1959 = vunpack.c.h.b16 %v1773
    %v1960 = vunpack.c.l.b16 %v1774
    %v1961 = vunpack.c.h.b16 %v1774
    %v1962 = vunpack.c.l.b16 %v1775
    %v1963 = vunpack.c.h.b16 %v1775
    %v1964 = vunpack.c.l.b16 %v1776
    %v1965 = vunpack.c.h.b16 %v1776
    %v1966 = vunpack.c.l.b16 %v1777
    %v1967 = vunpack.c.h.b16 %v1777
    %v1968 = vunpack.c.l.b16 %v1778
    %v1969 = vunpack.c.h.b16 %v1778
    %v1970 = vunpack.c.l.b16 %v1779
    %v1971 = vunpack.c.h.b16 %v1779
    %v1972 = vunpack.c.l.b16 %v1780
    %v1973 = vunpack.c.h.b16 %v1780
    %v1974 = vunpack.c.l.b16 %v1781
    %v1975 = vunpack.c.h.b16 %v1781
    %v1976 = vunpack.c.l.b16 %v1782
    %v1977 = vunpack.c.h.b16 %v1782
    %v1978 = vunpack.c.l.b16 %v1783
    %v1979 = vunpack.c.h.b16 %v1783
    %v1980 = vunpack.c.l.b16 %v1784
    %v1981 = vunpack.c.h.b16 %v1784
    %v1982 = vunpack.c.l.b16 %v1785
    %v1983 = vunpack.c.h.b16 %v1785
    %v1984 = vunpack.c.l.b16 %v1786
    %v1985 = vunpack.c.h.b16 %v1786
    %v1986 = vunpack.c.l.b16 %v1787
    %v1987 = vunpack.c.h.b16 %v1787
    %v1988 = vunpack.c.l.b16 %v1788
    %v1989 = vunpack.c.h.b16 %v1788
    %v1990 = vunpack.c.l.b16 %v1789
    %v1991 = vunpack.c.h.b16 %v1789
    %v1992 = vunpack.c.l.b16 %v1790
    %v1993 = vunpack.c.h.b16 %v1790
    %v1994 = vunpack.c.l.b16 %v1791
    %v1995 = vunpack.c.h.b16 %v1791
    %v1996 = vunpack.c.l.b16 %v1792
    %v1997 = vunpack.c.h.b16 %v1792
    %v1998 = vunpack.c.l.b16 %v1793
    %v1999 = vunpack.c.h.b16 %v1793
    %v2000 = vunpack.c.l.b16 %v1794
    %v2001 = vunpack.c.h.b16 %v1794
    %v2002 = vunpack.c.l.b16 %v1795
    %v2003 = vunpack.c.h.b16 %v1795
    %v2004 = vunpack.c.l.b16 %v1796
    %v2005 = vunpack.c.h.b16 %v1796
    %v2006 = vunpack.c.l.b16 %v1797
    %v2007 = vunpack.c.h.b16 %v1797
    %v2008 = vunpack.c.l.b16 %v1798
    %v2009 = vunpack.c.h.b16 %v1798
    %v2010 = vunpack.c.l.b16 %v1799
    %v2011 = vunpack.c.h.b16 %v1799
    %v2012 = vunpack.c.l.b16 %v1800
    %v2013 = vunpack.c.h.b16 %v1800
    %v2014 = vunpack.c.l.b16 %v1801
    %v2015 = vunpack.c.h.b16 %v1801
    %v2016 = vunpack.c.l.b16 %v1802
    %v2017 = vunpack.c.h.b16 %v1802
    %v2018 = vunpack.c.l.b16 %v1803
    %v2019 = vunpack.c.h.b16 %v1803
    %v2020 = vunpack.c.l.b16 %v1804
    %v2021 = vunpack.c.h.b16 %v1804
    %v2022 = vunpack.c.l.b16 %v1805
    %v2023 = vunpack.c.h.b16 %v1805
    %v2024 = vunpack.c.l.b16 %v1806
    %v2025 = vunpack.c.h.b16 %v1806
    %v2026 = vunpack.c.l.b16 %v1807
    %v2027 = vunpack.c.h.b16 %v1807
    %v2028 = vunpack.c.l.b16 %v1808
    %v2029 = vunpack.c.h.b16 %v1808
    %v2030 = vunpack.c.l.b16 %v1809
    %v2031 = vunpack.c.h.b16 %v1809
    %v2032 = vunpack.c.l.b16 %v1810
    %v2033 = vunpack.c.h.b16 %v1810
    %v2034 = vunpack.c.l.b16 %v1811
    %v2035 = vunpack.c.h.b16 %v1811
    %v2036 = vunpack.c.l.b16 %v1812
    %v2037 = vunpack.c.h.b16 %v1812
    %v2038 = vunpack.c.l.b16 %v1813
    %v2039 = vunpack.c.h.b16 %v1813
    %v2040 = vunpack.c.l.b16 %v1814
    %v2041 = vunpack.c.h.b16 %v1814
    %v2042 = vunpack.c.l.b16 %v1815
    %v2043 = vunpack.c.h.b16 %v1815
    %v2044 = vunpack.c.l.b16 %v1816
    %v2045 = vunpack.c.h.b16 %v1816
    %v2046 = vunpack.c.l.b16 %v1817
    %v2047 = vunpack.c.h.b16 %v1817
    %v2048 = vunpack.c.l.b16 %v1818
    %v2049 = vunpack.c.h.b16 %v1818
    %v2050 = vunpack.c.l.b16 %v1819
    %v2051 = vunpack.c.h.b16 %v1819
    %v2052 = vunpack.c.l.b16 %v1820
    %v2053 = vunpack.c.h.b16 %v1820
    %v2054 = vunpack.c.l.b16 %v1821
    %v2055 = vunpack.c.h.b16 %v1821
    %v2056 = vunpack.c.l.b16 %v1822
    %v2057 = vunpack.c.h.b16 %v1822
    %v2058 = vunpack.c.l.b16 %v1823
    %v2059 = vunpack.c.h.b16 %v1823
    %v2060 = vunpack.c.l.b16 %v1824
    %v2061 = vunpack.c.h.b16 %v1824
    %v2062 = vunpack.c.l.b16 %v1825
    %v2063 = vunpack.c.h.b16 %v1825
    %v2064 = vunpack.c.l.b16 %v1826
    %v2065 = vunpack.c.h.b16 %v1826
    %v2066 = vunpack.c.l.b16 %v1827
    %v2067 = vunpack.c.h.b16 %v1827
    %v2068 = vunpack.c.l.b16 %v1828
    %v2069 = vunpack.c.h.b16 %v1828
    %v2070 = vunpack.c.l.b16 %v1829
    %v2071 = vunpack.c.h.b16 %v1829
    %v2072 = vunpack.c.l.b16 %v1830
    %v2073 = vunpack.c.h.b16 %v1830
    %v2074 = vunpack.c.l.b16 %v1831
    %v2075 = vunpack.c.h.b16 %v1831
    %v2076 = vunpack.c.l.b16 %v1832
    %v2077 = vunpack.c.h.b16 %v1832
    %v2078 = vunpack.c.l.b16 %v1833
    %v2079 = vunpack.c.h.b16 %v1833
    %v2080 = vunpack.c.l.b16 %v1834
    %v2081 = vunpack.c.h.b16 %v1834
    %v2082 = vunpack.c.l.b16 %v1835
    %v2083 = vunpack.c.h.b16 %v1835
    %v2084 = vpack.c.b16 %v1944, %v1940
    %v2085 = vpack.c.b16 %v1945, %v1941
    %v2086 = vpack.c.b16 %v1946, %v1942
    %v2087 = vpack.c.b16 %v1947, %v1943
    %v2088 = vpack.c.b16 %v1952, %v1948
    %v2089 = vpack.c.b16 %v1953, %v1949
    %v2090 = vpack.c.b16 %v1954, %v1950
    %v2091 = vpack.c.b16 %v1955, %v1951
    %v2092 = vpack.c.b16 %v1960, %v1956
    %v2093 = vpack.c.b16 %v1961, %v1957
    %v2094 = vpack.c.b16 %v1962, %v1958
    %v2095 = vpack.c.b16 %v1963, %v1959
    %v2096 = vpack.c.b16 %v1968, %v1964
    %v2097 = vpack.c.b16 %v1969, %v1965
    %v2098 = vpack.c.b16 %v1970, %v1966
    %v2099 = vpack.c.b16 %v1971, %v1967
    %v2100 = vpack.c.b16 %v1976, %v1972
    %v2101 = vpack.c.b16 %v1977, %v1973
    %v2102 = vpack.c.b16 %v1978, %v1974
    %v2103 = vpack.c.b16 %v1979, %v1975
    %v2104 = vpack.c.b16 %v1984, %v1980
    %v2105 = vpack.c.b16 %v1985, %v1981
    %v2106 = vpack.c.b16 %v1986, %v1982
    %v2107 = vpack.c.b16 %v1987, %v1983
    %v2108 = vpack.c.b16 %v1992, %v1988
    %v2109 = vpack.c.b16 %v1993, %v1989
    %v2110 = vpack.c.b16 %v1994, %v1990
    %v2111 = vpack.c.b16 %v1995, %v1991
    %v2112 = vpack.c.b16 %v2000, %v1996
    %v2113 = vpack.c.b16 %v2001, %v1997
    %v2114 = vpack.c.b16 %v2002, %v1998
    %v2115 = vpack.c.b16 %v2003, %v1999
    %v2116 = vpack.c.b16 %v2008, %v2004
    %v2117 = vpack.c.b16 %v2009, %v2005
    %v2118 = vpack.c.b16 %v2010, %v2006
    %v2119 = vpack.c.b16 %v2011, %v2007
    %v2120 = vpack.c.b16 %v2016, %v2012
    %v2121 = vpack.c.b16 %v2017, %v2013
    %v2122 = vpack.c.b16 %v2018, %v2014
    %v2123 = vpack.c.b16 %v2019, %v2015
    %v2124 = vpack.c.b16 %v2024, %v2020
    %v2125 = vpack.c.b16 %v2025, %v2021
    %v2126 = vpack.c.b16 %v2026, %v2022
    %v2127 = vpack.c.b16 %v2027, %v2023
    %v2128 = vpack.c.b16 %v2032, %v2028
    %v2129 = vpack.c.b16 %v2033, %v2029
    %v2130 = vpack.c.b16 %v2034, %v2030
    %v2131 = vpack.c.b16 %v2035, %v2031
    %v2132 = vpack.c.b16 %v2040, %v2036
    %v2133 = vpack.c.b16 %v2041, %v2037
    %v2134 = vpack.c.b16 %v2042, %v2038
    %v2135 = vpack.c.b16 %v2043, %v2039
    %v2136 = vpack.c.b16 %v2048, %v2044
    %v2137 = vpack.c.b16 %v2049, %v2045
    %v2138 = vpack.c.b16 %v2050, %v2046
    %v2139 = vpack.c.b16 %v2051, %v2047
    %v2140 = vpack.c.b16 %v2056, %v2052
    %v2141 = vpack.c.b16 %v2057, %v2053
    %v2142 = vpack.c.b16 %v2058, %v2054
    %v2143 = vpack.c.b16 %v2059, %v2055
    %v2144 = vpack.c.b16 %v2064, %v2060
    %v2145 = vpack.c.b16 %v2065, %v2061
    %v2146 = vpack.c.b16 %v2066, %v2062
    %v2147 = vpack.c.b16 %v2067, %v2063
    %v2148 = vpack.c.b16 %v2072, %v2068
    %v2149 = vpack.c.b16 %v2073, %v2069
    %v2150 = vpack.c.b16 %v2074, %v2070
    %v2151 = vpack.c.b16 %v2075, %v2071
    %v2152 = vpack.c.b16 %v2080, %v2076
    %v2153 = vpack.c.b16 %v2081, %v2077
    %v2154 = vpack.c.b16 %v2082, %v2078
    %v2155 = vpack.c.b16 %v2083, %v2079
    %vm2228 = vcmask 261120
    %v2230 = vsel %vm2228, %v1865, 0
    %2232 = vmatprep.subr.bf16.mxu0 %v2113
    %2233 = vmatpush1.bf16.msra.mxu0 %v2112
    %2234 = vmatprep.subr.bf16.mxu0 %v2109
    %2235 = vmatpush1.bf16.msra.mxu0 %v2108
    %2236 = vmatprep.subr.bf16.mxu0 %v2105
    %2237 = vmatpush1.bf16.msra.mxu0 %v2104
    %2238 = vmatprep.subr.bf16.mxu0 %v2101
    %2239 = vmatpush1.bf16.msra.mxu0 %v2100
    %2240 = vmatprep.subr.bf16.mxu0 %v2097
    %2241 = vmatpush1.bf16.msra.mxu0 %v2096
    %2242 = vmatprep.subr.bf16.mxu0 %v2093
    %2243 = vmatpush1.bf16.msra.mxu0 %v2092
    %2244 = vmatprep.subr.bf16.mxu0 %v2089
    %2245 = vmatpush1.bf16.msra.mxu0 %v2088
    %2246 = vmatprep.subr.bf16.mxu0 %v2085
    %2247 = vmatpush1.bf16.msra.mxu0 %v2084
    %2248 = vmatprep.subr.bf16.mxu0 %v2145
    %2249 = vmatpush2.bf16.msra.mxu0 %v2144
    %2250 = vmatprep.subr.bf16.mxu0 %v2141
    %2251 = vmatpush2.bf16.msra.mxu0 %v2140
    %2252 = vmatprep.subr.bf16.mxu0 %v2137
    %2253 = vmatpush2.bf16.msra.mxu0 %v2136
    %2254 = vmatprep.subr.bf16.mxu0 %v2133
    %2255 = vmatpush2.bf16.msra.mxu0 %v2132
    %2256 = vmatprep.subr.bf16.mxu0 %v2129
    %2257 = vmatpush2.bf16.msra.mxu0 %v2128
    %2258 = vmatprep.subr.bf16.mxu0 %v2125
    %2259 = vmatpush2.bf16.msra.mxu0 %v2124
    %2260 = vmatprep.subr.bf16.mxu0 %v2121
    %2261 = vmatpush2.bf16.msra.mxu0 %v2120
    %2262 = vmatprep.subr.bf16.mxu0 %v2117
    %2263 = vmatpush2.bf16.msra.mxu0 %v2116
    %2264 = vmatprep.mubr.bf16.mxu0 %v1864
    %2265 = vmatmul.mubr.bf16.gmra.mxu0 %v1857
    %v2266 = vpop.f32.mrf.mxu0
    %v2267 = vadd.f32 %v1840, %v2266
    %v2268 = vpop.f32.mrf.mxu0
    %v2269 = vadd.f32 %v1840, %v2268
    %v2270 = vpop.f32.mrf.mxu0
    %v2271 = vpop.f32.mrf.mxu0
    %2272 = vdwg.mxu0
    %2273 = vmatprep.subr.bf16.mxu0 0
    %2274 = vmatpush1.bf16.msra.mxu0 0
    %2275 = vmatprep.subr.bf16.mxu0 0
    %2276 = vmatpush1.bf16.msra.mxu0 0
    %2277 = vmatprep.subr.bf16.mxu0 0
    %2278 = vmatpush1.bf16.msra.mxu0 0
    %2279 = vmatprep.subr.bf16.mxu0 0
    %2280 = vmatpush1.bf16.msra.mxu0 0
    %2281 = vmatprep.subr.bf16.mxu0 0
    %2282 = vmatpush1.bf16.msra.mxu0 0
    %2283 = vmatprep.subr.bf16.mxu0 0
    %2284 = vmatpush1.bf16.msra.mxu0 0
    %2285 = vmatprep.subr.bf16.mxu0 %v2153
    %2286 = vmatpush1.bf16.msra.mxu0 %v2152
    %2287 = vmatprep.subr.bf16.mxu0 %v2149
    %2288 = vmatpush1.bf16.msra.mxu0 %v2148
    %2289 = vmatprep.subr.bf16.mxu0 0
    %2290 = vmatpush2.bf16.msra.mxu0 0
    %2291 = vmatprep.subr.bf16.mxu0 0
    %2292 = vmatpush2.bf16.msra.mxu0 0
    %2293 = vmatprep.subr.bf16.mxu0 0
    %2294 = vmatpush2.bf16.msra.mxu0 0
    %2295 = vmatprep.subr.bf16.mxu0 0
    %2296 = vmatpush2.bf16.msra.mxu0 0
    %2297 = vmatprep.subr.bf16.mxu0 0
    %2298 = vmatpush2.bf16.msra.mxu0 0
    %2299 = vmatprep.subr.bf16.mxu0 0
    %2300 = vmatpush2.bf16.msra.mxu0 0
    %2301 = vmatprep.subr.bf16.mxu0 0
    %2302 = vmatpush2.bf16.msra.mxu0 0
    %2303 = vmatprep.subr.bf16.mxu0 0
    %2304 = vmatpush2.bf16.msra.mxu0 0
    %2305 = vmatprep.mubr.bf16.mxu0 0
    %2306 = vmatmul.mubr.bf16.gmra.mxu0 %v2230
    %v2307 = vpop.f32.mrf.mxu0
    %v2308 = vadd.f32 %v2267, %v2307
    %v2309 = vpop.f32.mrf.mxu0
    %v2310 = vadd.f32 %v2269, %v2309
    %v2311 = vpop.f32.mrf.mxu0
    %v2312 = vpop.f32.mrf.mxu0
    %2313 = vdwg.mxu0
    %2314 = vmatprep.subr.bf16.mxu0 %v2115
    %2315 = vmatpush1.bf16.msra.mxu0 %v2114
    %2316 = vmatprep.subr.bf16.mxu0 %v2111
    %2317 = vmatpush1.bf16.msra.mxu0 %v2110
    %2318 = vmatprep.subr.bf16.mxu0 %v2107
    %2319 = vmatpush1.bf16.msra.mxu0 %v2106
    %2320 = vmatprep.subr.bf16.mxu0 %v2103
    %2321 = vmatpush1.bf16.msra.mxu0 %v2102
    %2322 = vmatprep.subr.bf16.mxu0 %v2099
    %2323 = vmatpush1.bf16.msra.mxu0 %v2098
    %2324 = vmatprep.subr.bf16.mxu0 %v2095
    %2325 = vmatpush1.bf16.msra.mxu0 %v2094
    %2326 = vmatprep.subr.bf16.mxu0 %v2091
    %2327 = vmatpush1.bf16.msra.mxu0 %v2090
    %2328 = vmatprep.subr.bf16.mxu0 %v2087
    %2329 = vmatpush1.bf16.msra.mxu0 %v2086
    %2330 = vmatprep.subr.bf16.mxu0 %v2147
    %2331 = vmatpush2.bf16.msra.mxu0 %v2146
    %2332 = vmatprep.subr.bf16.mxu0 %v2143
    %2333 = vmatpush2.bf16.msra.mxu0 %v2142
    %2334 = vmatprep.subr.bf16.mxu0 %v2139
    %2335 = vmatpush2.bf16.msra.mxu0 %v2138
    %2336 = vmatprep.subr.bf16.mxu0 %v2135
    %2337 = vmatpush2.bf16.msra.mxu0 %v2134
    %2338 = vmatprep.subr.bf16.mxu0 %v2131
    %2339 = vmatpush2.bf16.msra.mxu0 %v2130
    %2340 = vmatprep.subr.bf16.mxu0 %v2127
    %2341 = vmatpush2.bf16.msra.mxu0 %v2126
    %2342 = vmatprep.subr.bf16.mxu0 %v2123
    %2343 = vmatpush2.bf16.msra.mxu0 %v2122
    %2344 = vmatprep.subr.bf16.mxu0 %v2119
    %2345 = vmatpush2.bf16.msra.mxu0 %v2118
    %2346 = vmatprep.mubr.bf16.mxu0 %v1864
    %2347 = vmatmul.mubr.bf16.gmra.mxu0 %v1857
    %v2348 = vpop.f32.mrf.mxu0
    %v2349 = vadd.f32 %v1840, %v2348
    %v2350 = vpop.f32.mrf.mxu0
    %v2351 = vadd.f32 %v1840, %v2350
    %v2352 = vpop.f32.mrf.mxu0
    %v2353 = vpop.f32.mrf.mxu0
    %2354 = vdwg.mxu0
    %2355 = vmatprep.subr.bf16.mxu0 0
    %2356 = vmatpush1.bf16.msra.mxu0 0
    %2357 = vmatprep.subr.bf16.mxu0 0
    %2358 = vmatpush1.bf16.msra.mxu0 0
    %2359 = vmatprep.subr.bf16.mxu0 0
    %2360 = vmatpush1.bf16.msra.mxu0 0
    %2361 = vmatprep.subr.bf16.mxu0 0
    %2362 = vmatpush1.bf16.msra.mxu0 0
    %2363 = vmatprep.subr.bf16.mxu0 0
    %2364 = vmatpush1.bf16.msra.mxu0 0
    %2365 = vmatprep.subr.bf16.mxu0 0
    %2366 = vmatpush1.bf16.msra.mxu0 0
    %2367 = vmatprep.subr.bf16.mxu0 %v2155
    %2368 = vmatpush1.bf16.msra.mxu0 %v2154
    %2369 = vmatprep.subr.bf16.mxu0 %v2151
    %2370 = vmatpush1.bf16.msra.mxu0 %v2150
    %2371 = vmatprep.subr.bf16.mxu0 0
    %2372 = vmatpush2.bf16.msra.mxu0 0
    %2373 = vmatprep.subr.bf16.mxu0 0
    %2374 = vmatpush2.bf16.msra.mxu0 0
    %2375 = vmatprep.subr.bf16.mxu0 0
    %2376 = vmatpush2.bf16.msra.mxu0 0
    %2377 = vmatprep.subr.bf16.mxu0 0
    %2378 = vmatpush2.bf16.msra.mxu0 0
    %2379 = vmatprep.subr.bf16.mxu0 0
    %2380 = vmatpush2.bf16.msra.mxu0 0
    %2381 = vmatprep.subr.bf16.mxu0 0
    %2382 = vmatpush2.bf16.msra.mxu0 0
    %2383 = vmatprep.subr.bf16.mxu0 0
    %2384 = vmatpush2.bf16.msra.mxu0 0
    %2385 = vmatprep.subr.bf16.mxu0 0
    %2386 = vmatpush2.bf16.msra.mxu0 0
    %2387 = vmatprep.mubr.bf16.mxu0 0
    %2388 = vmatmul.mubr.bf16.gmra.mxu0 %v2230
    %v2389 = vpop.f32.mrf.mxu0
    %v2390 = vadd.f32 %v2349, %v2389
    %v2391 = vpop.f32.mrf.mxu0
    %v2392 = vadd.f32 %v2351, %v2391
    %v2393 = vpop.f32.mrf.mxu0
    %v2394 = vpop.f32.mrf.mxu0
    %2395 = vdwg.mxu0
    %v2396 = vtanh.pop %v2308
    %v2397 = vtanh.pop %v2310
    %v2398 = vtanh.pop %v2390
    %v2399 = vtanh.pop %v2392
    %v2402 = vcombine.low %v2396, %v2397
    %v2404 = vunpack.c.l.s4 1983009808
    %v2405 = vunpack.c.0.s8 %v2404
    %v2406 = vlaneseq
    %v2407 = vshrl.u32 %v2406, 7
    %v2408 = vsub.s32 %v2405, %v2407
    %v2409 = vrot.slane %v2402, %v2408
    %2411 = vst [vmem:[#allocation6] sm:$0xf] %v2409
    %v2414 = vcombine.low %v2398, %v2399
    %v2416 = vunpack.c.l.s4 1983009808
    %v2417 = vunpack.c.0.s8 %v2416
    %v2418 = vlaneseq
    %v2419 = vshrl.u32 %v2418, 7
    %v2420 = vsub.s32 %v2417, %v2419
    %v2421 = vrot.slane %v2414, %v2420
    %s2423 = scalar_lea.vmem [#allocation6], 4
    %2424 = vst [vmem:[%s2423] sm:$0xf] %v2421
    // Predicated region
    $region26: #{tpu_custom_call.1} parent=1 // pred_check
      _
    $region27: #{tpu_custom_call.1} parent=1 // pred_check_branch
      %2426 = sbr.rel (0) target = $region29
    $region28: #{tpu_custom_call.1} parent=1 // pred_region
      %s2428 = ssub.s32 128, 128
      %2429 = vsyncadd [#allocation7], %s2428
      %s2430 = sshll.u32 [#allocation6], 4
      %s2431 = int_to_ptr.vmem [resolvable:$true] %s2430
      %2436 = dma.vmem_to_hbm [thread:$0]  %s2431, 128, %s5, [#allocation7], 64, 64, 4
    $region29: #{tpu_custom_call.1} parent=1 // pred_fallthru
      _
    // Predicated region
    $region30: #{tpu_custom_call.1} parent=1 // pred_check
      _
    $region31: #{tpu_custom_call.1} parent=1 // pred_check_branch
      %2438 = sbr.rel (0) target = $region33
    $region32: #{tpu_custom_call.1} parent=1 // pred_region
      %2439 = dma.done [#allocation7], 128
    $region33: #{tpu_custom_call.1} parent=1 // pred_fallthru
      _
    %2440 = vsyncpa [#allocation7], 1

</llo_original>
